<compile_context>
chip_gen: v5e
topology: v5e:2x2
jax: 0.10.0
libtpu: 0.0.40
codegen_flags: <defaults>
</compile_context>

<pallas_src>
import functools

import jax
import jax.numpy as jnp
from jax.experimental import pallas as pl
from jax.experimental.pallas import tpu as pltpu


CP = 128    # lane-dense padded channel width for every stage (stem/block/head/embedding)
TAPS = 9    # 3x3 conv taps


# ----------------------------- fused Pallas kernel -----------------------------

def _trunk_fused_kernel(cols_ref, w_stem_ref, w_blk_ref, w_proj_ref,
                        w_head_ref, w_fc_ref, b_ref,
                        out_ref, xpad_ref, colsbuf_ref, skip_ref, *, ho, wo):
    """One batch element per grid step; every activation stays in VMEM/vregs."""
    C = CP
    m = ho * wo

    ball = b_ref[...]                                    # (8, C) f32; rows 0..4 used

    # ---- stem: conv3x3/s2 (wrapper-side im2col, bf16 MXU operands) + BN bias + SiLU ----
    y = jnp.dot(cols_ref[...], w_stem_ref[...], preferred_element_type=jnp.float32)
    y = y + ball[0:1, :]
    y = y * jax.nn.sigmoid(y)                            # SiLU in f32
    skip_ref[...] = y                                    # residual source, re-read at add site

    # ---- stage halo-padded stem fmap with ALIGNED stores only --------------------------
    # Columns [wo : 2*wo) hold the feature map (sublane offset wo == f32 tile boundary);
    # column wo-1 / 2*wo and rows 0 / ho+1 are the zero halo.
    xpad_ref[...] = jnp.zeros_like(xpad_ref)
    xpad_ref[1:ho + 1, wo:2 * wo, :] = y.reshape(ho, wo, C)

    # ---- block-conv im2col: 3 staged W-windows (2 shifted reads total), free H slices,
    #      lane-aligned slab stores into (m, 9*C) bf16 buffer, ONE deep-K matmul ----------
    for dj in range(3):
        xw = xpad_ref[:, wo - 1 + dj:2 * wo - 1 + dj, :]          # (ho+2, wo, C)
        for di in range(3):
            t = di * 3 + dj
            slab = xw[di:di + ho].reshape(m, C).astype(jnp.bfloat16)
            colsbuf_ref[:, t * C:(t + 1) * C] = slab              # lane offset t*128: aligned

    h = jnp.dot(colsbuf_ref[...], w_blk_ref[...], preferred_element_type=jnp.float32)
    h = h + ball[1:2, :]
    h = h * jax.nn.sigmoid(h)                            # SiLU in f32

    # 1x1 projection conv + folded-BN bias + residual (skip loaded only at the add site)
    p = jnp.dot(h.astype(jnp.bfloat16), w_proj_ref[...], preferred_element_type=jnp.float32)
    p = p + ball[2:3, :] + skip_ref[...]

    # ---- head conv1x1 + folded-BN bias + SiLU -------------------------------------------
    hd = jnp.dot(p.astype(jnp.bfloat16), w_head_ref[...], preferred_element_type=jnp.float32)
    hd = hd + ball[3:4, :]
    hd = hd * jax.nn.sigmoid(hd)

    # ---- global average pool + classifier (dropout p=0.0 -> identity) -------------------
    gap = jnp.mean(hd, axis=0, keepdims=True)            # (1, C) f32
    emb = jnp.dot(gap.astype(jnp.bfloat16), w_fc_ref[...], preferred_element_type=jnp.float32)
    emb = emb + ball[4:5, :]
    out_ref[...] = emb.reshape(1, 1, C).astype(out_ref.dtype)


def trunk_fused_call(cols, w_stem, w_blk, w_proj, w_head, w_fc, b_all, *, batch, ho, wo):
    m = ho * wo
    kernel = functools.partial(_trunk_fused_kernel, ho=ho, wo=wo)

    def resident(shape):
        # Same block index every grid step -> fetched once, stays resident in VMEM.
        return pl.BlockSpec(shape, lambda b: (0,) * len(shape))

    out = pl.pallas_call(
        kernel,
        out_shape=jax.ShapeDtypeStruct((batch, 1, CP), jnp.float32),
        grid=(batch,),
        in_specs=[
            pl.BlockSpec((m, CP), lambda b: (b, 0)),     # per-batch stem im2col (bf16)
            resident((CP, CP)),                          # w_stem (BN folded, bf16)
            resident((TAPS * CP, CP)),                   # w_blk: 9 taps stacked along K (bf16)
            resident((CP, CP)),                          # w_proj (bf16)
            resident((CP, CP)),                          # w_head (bf16)
            resident((CP, CP)),                          # w_fc   (bf16)
            resident((8, CP)),                           # packed biases (f32)
        ],
        out_specs=pl.BlockSpec((1, 1, CP), lambda b: (b, 0, 0)),
        scratch_shapes=[
            pltpu.VMEM((ho + 2, 3 * wo, CP), jnp.float32),   # halo-padded stem fmap
            pltpu.VMEM((m, TAPS * CP), jnp.bfloat16),        # block-conv im2col staging
            pltpu.VMEM((m, CP), jnp.float32),                # residual (skip) buffer
        ],
        compiler_params=pltpu.CompilerParams(
            dimension_semantics=("parallel",)),              # megacore split on v7x
    )(cols, w_stem, w_blk, w_proj, w_head, w_fc, b_all)
    return out[:, 0, :]


# ----------------------------- plain-JAX glue -----------------------------

def im2col(x_bhwc, kh, kw, stride, padding):
    """Extract conv patches (stem only; tiny at this size). Returns (B*Ho*Wo, kh*kw*C), Ho, Wo."""
    x = jnp.pad(x_bhwc, ((0, 0), (padding, padding), (padding, padding), (0, 0)))
    B, Hp, Wp, C = x.shape
    Ho = (Hp - kh) // stride + 1
    Wo = (Wp - kw) // stride + 1
    patches = []
    for i in range(kh):
        for j in range(kw):
            patches.append(x[:, i:i + Ho * stride:stride, j:j + Wo * stride:stride, :])
    cols = jnp.concatenate(patches, axis=-1)
    return cols.reshape(B * Ho * Wo, kh * kw * C), Ho, Wo


def fold_bn(gamma, beta, mean, var, eps=1e-5):
    scale = gamma / jnp.sqrt(var + eps)
    bias = beta - mean * scale
    return scale, bias


def _pad2d(w):
    r, c = w.shape
    return jnp.pad(w, ((0, CP - r), (0, CP - c)))       # zero-pad -> padded lanes stay 0


def _pad_vec(b):
    return jnp.pad(b, (0, CP - b.shape[0]))


# ----------------------------- parameter init -----------------------------

def init_params(key, in_ch=3, stem_ch=16, block_ch=16, head_ch=64, embedding_dim=32):
    ks = jax.random.split(key, 8)

    def w(k, shape, fan_in):
        return (jax.random.normal(k, shape, jnp.float32) / jnp.sqrt(fan_in)).astype(jnp.float32)

    def bn(c, seed):
        k = jax.random.PRNGKey(seed)
        k1, k2, k3, k4 = jax.random.split(k, 4)
        gamma = 1.0 + 0.1 * jax.random.normal(k1, (c,), jnp.float32)
        beta = 0.1 * jax.random.normal(k2, (c,), jnp.float32)
        mean = 0.1 * jax.random.normal(k3, (c,), jnp.float32)
        var = 1.0 + 0.1 * jax.random.uniform(k4, (c,), jnp.float32)
        return (gamma, beta, mean, var)

    params = {
        "stem_w": w(ks[0], (3, 3, in_ch, stem_ch), 9 * in_ch),
        "stem_bn": bn(stem_ch, 1),
        "blk_conv_w": w(ks[1], (3, 3, stem_ch, block_ch), 9 * stem_ch),
        "blk_conv_bn": bn(block_ch, 2),
        "blk_proj_w": w(ks[2], (1, 1, block_ch, block_ch), block_ch),
        "blk_proj_bn": bn(block_ch, 3),
        "head_w": w(ks[3], (1, 1, block_ch, head_ch), block_ch),
        "head_bn": bn(head_ch, 4),
        "fc_w": w(ks[4], (head_ch, embedding_dim), head_ch),
        "fc_b": 0.1 * jax.random.normal(ks[5], (embedding_dim,), jnp.float32),
    }
    return params


# ----------------------------- Trunk forward -----------------------------

def trunk_forward(params, x_nchw):
    # Input is NCHW (PyTorch layout); convert to NHWC for the TPU-friendly kernel.
    x = jnp.transpose(x_nchw, (0, 2, 3, 1)).astype(jnp.float32)
    B = x.shape[0]

    # Stem im2col (tiny: 3-channel 16x16 input -> 128x27). The 3x3 block conv inside the
    # kernel uses the in-VMEM staged im2col + single deep-K matmul path instead.
    cols, Ho, Wo = im2col(x, 3, 3, 2, 1)
    cols = jnp.pad(cols, ((0, 0), (0, CP - cols.shape[1]))).astype(jnp.bfloat16)

    # Fold BN scale into the weights; pad every channel dim to CP=128 with zeros so padded
    # lanes stay exactly zero through every stage; cast matmul weights to bf16.
    s_scale, s_bias = fold_bn(*params["stem_bn"])
    w_stem = _pad2d(params["stem_w"].reshape(-1, params["stem_w"].shape[-1])
                    * s_scale[None, :]).astype(jnp.bfloat16)

    c_scale, c_bias = fold_bn(*params["blk_conv_bn"])
    wb = params["blk_conv_w"] * c_scale[None, None, None, :]
    kh, kw, cin, cout = wb.shape
    w_blk = jnp.pad(wb.reshape(kh * kw, cin, cout),
                    ((0, 0), (0, CP - cin), (0, CP - cout)))
    w_blk = w_blk.reshape(kh * kw * CP, CP).astype(jnp.bfloat16)   # (1152, 128), K-stacked taps

    p_scale, p_bias = fold_bn(*params["blk_proj_bn"])
    w_proj = _pad2d(params["blk_proj_w"][0, 0] * p_scale[None, :]).astype(jnp.bfloat16)

    h_scale, h_bias = fold_bn(*params["head_bn"])
    w_head = _pad2d(params["head_w"][0, 0] * h_scale[None, :]).astype(jnp.bfloat16)

    w_fc = _pad2d(params["fc_w"]).astype(jnp.bfloat16)

    # Pack all per-stage biases (f32) into a single (8, CP) input.
    b_all = jnp.zeros((8, CP), jnp.float32)
    b_all = b_all.at[0].set(_pad_vec(s_bias))
    b_all = b_all.at[1].set(_pad_vec(c_bias))
    b_all = b_all.at[2].set(_pad_vec(p_bias))
    b_all = b_all.at[3].set(_pad_vec(h_bias))
    b_all = b_all.at[4].set(_pad_vec(params["fc_b"]))

    # TODO(synk): full efficientnetv2_rw_m block stack (SE blocks, 50+ MBConv layers,
    # pretrained weights) not reproduced; this is a structurally-representative miniature.
    emb = trunk_fused_call(cols, w_stem, w_blk, w_proj, w_head, w_fc, b_all,
                           batch=B, ho=Ho, wo=Wo)

    # Drop the lane padding back to the real embedding width.
    return emb[:, :params["fc_w"].shape[1]]


# ----------------------------- driver -----------------------------

if __name__ == "__main__":
    key = jax.random.PRNGKey(0)
    k_params, k_x = jax.random.split(key)

    B, C, H, W = 2, 3, 16, 16
    embedding_dim = 32

    params = init_params(k_params, in_ch=C, embedding_dim=embedding_dim)
    x = jax.random.normal(k_x, (B, C, H, W), jnp.float32)

    out = jax.jit(trunk_forward)(params, x)
    out = jax.block_until_ready(out)
    assert out.shape == (B, embedding_dim), out.shape
    assert out.dtype == jnp.float32
    assert bool(jnp.all(jnp.isfinite(out)))

    print("KERNEL_OK")
</pallas_src>

<mosaic_0001>
module attributes {stable_mosaic.version = 11 : i64} {
  func.func @_trunk_fused_kernel(%arg0: i32, %arg1: memref<64x128xbf16, #tpu.memory_space<vmem>>, %arg2: memref<128x128xbf16, #tpu.memory_space<vmem>>, %arg3: memref<1152x128xbf16, #tpu.memory_space<vmem>>, %arg4: memref<128x128xbf16, #tpu.memory_space<vmem>>, %arg5: memref<128x128xbf16, #tpu.memory_space<vmem>>, %arg6: memref<128x128xbf16, #tpu.memory_space<vmem>>, %arg7: memref<8x128xf32, #tpu.memory_space<vmem>>, %arg8: memref<1x1x128xf32, #tpu.memory_space<vmem>>, %arg9: memref<10x24x128xf32, #tpu.memory_space<vmem>>, %arg10: memref<64x1152xbf16, #tpu.memory_space<vmem>>, %arg11: memref<64x128xf32, #tpu.memory_space<vmem>>) attributes {dimension_semantics = [#tpu.dimension_semantics<parallel>], iteration_bounds = array<i64: 2>, scalar_prefetch = 0 : i64, scratch_operands = 3 : i64, tpu.core_type = #tpu.core_type<tc>, window_params = [{transform_indices = @transform_0, window_bounds = array<i64: 64, 128>}, {pipeline_mode = #tpu.pipeline_mode<synchronous>, transform_indices = @transform_1, window_bounds = array<i64: 128, 128>}, {pipeline_mode = #tpu.pipeline_mode<synchronous>, transform_indices = @transform_2, window_bounds = array<i64: 1152, 128>}, {pipeline_mode = #tpu.pipeline_mode<synchronous>, transform_indices = @transform_3, window_bounds = array<i64: 128, 128>}, {pipeline_mode = #tpu.pipeline_mode<synchronous>, transform_indices = @transform_4, window_bounds = array<i64: 128, 128>}, {pipeline_mode = #tpu.pipeline_mode<synchronous>, transform_indices = @transform_5, window_bounds = array<i64: 128, 128>}, {pipeline_mode = #tpu.pipeline_mode<synchronous>, transform_indices = @transform_6, window_bounds = array<i64: 8, 128>}, {transform_indices = @transform_7, window_bounds = array<i64: 1, 1, 128>}]} {
    %c0 = arith.constant 0 : index
    %c0_0 = arith.constant 0 : index
    %0 = vector.load %arg7[%c0, %c0_0] : memref<8x128xf32, #tpu.memory_space<vmem>>, vector<8x128xf32>
    %c0_1 = arith.constant 0 : index
    %c0_2 = arith.constant 0 : index
    %1 = vector.load %arg1[%c0_1, %c0_2] : memref<64x128xbf16, #tpu.memory_space<vmem>>, vector<64x128xbf16>
    %c0_3 = arith.constant 0 : index
    %c0_4 = arith.constant 0 : index
    %2 = vector.load %arg2[%c0_3, %c0_4] : memref<128x128xbf16, #tpu.memory_space<vmem>>, vector<128x128xbf16>
    %cst = arith.constant dense<0.000000e+00> : vector<64x128xf32>
    %3 = tpu.matmul %1, %2, %cst {dimension_numbers = #tpu.dot_dimension_numbers<[1], [0], [0], [1], [0, 0, 1, 1], [], []>} : vector<64x128xbf16>, vector<128x128xbf16>, vector<64x128xf32> -> vector<64x128xf32>
    %4 = vector.extract_strided_slice %0 {offsets = [0, 0], sizes = [1, 128], strides = [1, 1]} : vector<8x128xf32> to vector<1x128xf32>
    %5 = vector.broadcast %4 : vector<1x128xf32> to vector<64x128xf32>
    %6 = arith.addf %3, %5 : vector<64x128xf32>
    %7 = arith.negf %6 : vector<64x128xf32>
    %8 = math.exp %7 : vector<64x128xf32>
    %cst_5 = arith.constant 1.000000e+00 : f32
    %9 = vector.broadcast %cst_5 : f32 to vector<64x128xf32>
    %10 = arith.addf %9, %8 : vector<64x128xf32>
    %11 = arith.divf %9, %10 : vector<64x128xf32>
    %12 = arith.mulf %6, %11 : vector<64x128xf32>
    %c0_6 = arith.constant 0 : index
    %c0_7 = arith.constant 0 : index
    %13 = vector.load %arg11[%c0_6, %c0_7] : memref<64x128xf32, #tpu.memory_space<vmem>>, vector<64x128xf32>
    tpu.vector_store %arg11[%c0_6, %c0_7], %12 {strides = array<i32>} : memref<64x128xf32, #tpu.memory_space<vmem>>, vector<64x128xf32>,
    %cst_8 = arith.constant 0.000000e+00 : f32
    %14 = vector.broadcast %cst_8 : f32 to vector<10x24x128xf32>
    %c0_9 = arith.constant 0 : index
    %c0_10 = arith.constant 0 : index
    %c0_11 = arith.constant 0 : index
    %15 = vector.load %arg9[%c0_9, %c0_10, %c0_11] : memref<10x24x128xf32, #tpu.memory_space<vmem>>, vector<10x24x128xf32>
    tpu.vector_store %arg9[%c0_9, %c0_10, %c0_11], %14 {strides = array<i32>} : memref<10x24x128xf32, #tpu.memory_space<vmem>>, vector<10x24x128xf32>,
    %16 = vector.shape_cast %12 : vector<64x128xf32> to vector<8x8x128xf32>
    %c1 = arith.constant 1 : index
    %c8 = arith.constant 8 : index
    %c0_12 = arith.constant 0 : index
    %17 = vector.load %arg9[%c1, %c8, %c0_12] : memref<10x24x128xf32, #tpu.memory_space<vmem>>, vector<8x8x128xf32>
    tpu.vector_store %arg9[%c1, %c8, %c0_12], %16 {strides = array<i32>} : memref<10x24x128xf32, #tpu.memory_space<vmem>>, vector<8x8x128xf32>,
    %c0_13 = arith.constant 0 : index
    %c7 = arith.constant 7 : index
    %c0_14 = arith.constant 0 : index
    %18 = vector.load %arg9[%c0_13, %c7, %c0_14] : memref<10x24x128xf32, #tpu.memory_space<vmem>>, vector<10x8x128xf32>
    %19 = vector.extract_strided_slice %18 {offsets = [0, 0, 0], sizes = [8, 8, 128], strides = [1, 1, 1]} : vector<10x8x128xf32> to vector<8x8x128xf32>
    %20 = vector.shape_cast %19 : vector<8x8x128xf32> to vector<64x128xf32>
    %21 = arith.truncf %20 : vector<64x128xf32> to vector<64x128xbf16>
    %c0_15 = arith.constant 0 : index
    %c0_16 = arith.constant 0 : index
    %22 = vector.load %arg10[%c0_15, %c0_16] : memref<64x1152xbf16, #tpu.memory_space<vmem>>, vector<64x128xbf16>
    tpu.vector_store %arg10[%c0_15, %c0_16], %21 {strides = array<i32>} : memref<64x1152xbf16, #tpu.memory_space<vmem>>, vector<64x128xbf16>,
    %23 = vector.extract_strided_slice %18 {offsets = [1, 0, 0], sizes = [8, 8, 128], strides = [1, 1, 1]} : vector<10x8x128xf32> to vector<8x8x128xf32>
    %24 = vector.shape_cast %23 : vector<8x8x128xf32> to vector<64x128xf32>
    %25 = arith.truncf %24 : vector<64x128xf32> to vector<64x128xbf16>
    %c0_17 = arith.constant 0 : index
    %c384 = arith.constant 384 : index
    %26 = vector.load %arg10[%c0_17, %c384] : memref<64x1152xbf16, #tpu.memory_space<vmem>>, vector<64x128xbf16>
    tpu.vector_store %arg10[%c0_17, %c384], %25 {strides = array<i32>} : memref<64x1152xbf16, #tpu.memory_space<vmem>>, vector<64x128xbf16>,
    %27 = vector.extract_strided_slice %18 {offsets = [2, 0, 0], sizes = [8, 8, 128], strides = [1, 1, 1]} : vector<10x8x128xf32> to vector<8x8x128xf32>
    %28 = vector.shape_cast %27 : vector<8x8x128xf32> to vector<64x128xf32>
    %29 = arith.truncf %28 : vector<64x128xf32> to vector<64x128xbf16>
    %c0_18 = arith.constant 0 : index
    %c768 = arith.constant 768 : index
    %30 = vector.load %arg10[%c0_18, %c768] : memref<64x1152xbf16, #tpu.memory_space<vmem>>, vector<64x128xbf16>
    tpu.vector_store %arg10[%c0_18, %c768], %29 {strides = array<i32>} : memref<64x1152xbf16, #tpu.memory_space<vmem>>, vector<64x128xbf16>,
    %c0_19 = arith.constant 0 : index
    %c8_20 = arith.constant 8 : index
    %c0_21 = arith.constant 0 : index
    %31 = vector.load %arg9[%c0_19, %c8_20, %c0_21] : memref<10x24x128xf32, #tpu.memory_space<vmem>>, vector<10x8x128xf32>
    %32 = vector.extract_strided_slice %31 {offsets = [0, 0, 0], sizes = [8, 8, 128], strides = [1, 1, 1]} : vector<10x8x128xf32> to vector<8x8x128xf32>
    %33 = vector.shape_cast %32 : vector<8x8x128xf32> to vector<64x128xf32>
    %34 = arith.truncf %33 : vector<64x128xf32> to vector<64x128xbf16>
    %c0_22 = arith.constant 0 : index
    %c128 = arith.constant 128 : index
    %35 = vector.load %arg10[%c0_22, %c128] : memref<64x1152xbf16, #tpu.memory_space<vmem>>, vector<64x128xbf16>
    tpu.vector_store %arg10[%c0_22, %c128], %34 {strides = array<i32>} : memref<64x1152xbf16, #tpu.memory_space<vmem>>, vector<64x128xbf16>,
    %36 = vector.extract_strided_slice %31 {offsets = [1, 0, 0], sizes = [8, 8, 128], strides = [1, 1, 1]} : vector<10x8x128xf32> to vector<8x8x128xf32>
    %37 = vector.shape_cast %36 : vector<8x8x128xf32> to vector<64x128xf32>
    %38 = arith.truncf %37 : vector<64x128xf32> to vector<64x128xbf16>
    %c0_23 = arith.constant 0 : index
    %c512 = arith.constant 512 : index
    %39 = vector.load %arg10[%c0_23, %c512] : memref<64x1152xbf16, #tpu.memory_space<vmem>>, vector<64x128xbf16>
    tpu.vector_store %arg10[%c0_23, %c512], %38 {strides = array<i32>} : memref<64x1152xbf16, #tpu.memory_space<vmem>>, vector<64x128xbf16>,
    %40 = vector.extract_strided_slice %31 {offsets = [2, 0, 0], sizes = [8, 8, 128], strides = [1, 1, 1]} : vector<10x8x128xf32> to vector<8x8x128xf32>
    %41 = vector.shape_cast %40 : vector<8x8x128xf32> to vector<64x128xf32>
    %42 = arith.truncf %41 : vector<64x128xf32> to vector<64x128xbf16>
    %c0_24 = arith.constant 0 : index
    %c896 = arith.constant 896 : index
    %43 = vector.load %arg10[%c0_24, %c896] : memref<64x1152xbf16, #tpu.memory_space<vmem>>, vector<64x128xbf16>
    tpu.vector_store %arg10[%c0_24, %c896], %42 {strides = array<i32>} : memref<64x1152xbf16, #tpu.memory_space<vmem>>, vector<64x128xbf16>,
    %c0_25 = arith.constant 0 : index
    %c9 = arith.constant 9 : index
    %c0_26 = arith.constant 0 : index
    %44 = vector.load %arg9[%c0_25, %c9, %c0_26] : memref<10x24x128xf32, #tpu.memory_space<vmem>>, vector<10x8x128xf32>
    %45 = vector.extract_strided_slice %44 {offsets = [0, 0, 0], sizes = [8, 8, 128], strides = [1, 1, 1]} : vector<10x8x128xf32> to vector<8x8x128xf32>
    %46 = vector.shape_cast %45 : vector<8x8x128xf32> to vector<64x128xf32>
    %47 = arith.truncf %46 : vector<64x128xf32> to vector<64x128xbf16>
    %c0_27 = arith.constant 0 : index
    %c256 = arith.constant 256 : index
    %48 = vector.load %arg10[%c0_27, %c256] : memref<64x1152xbf16, #tpu.memory_space<vmem>>, vector<64x128xbf16>
    tpu.vector_store %arg10[%c0_27, %c256], %47 {strides = array<i32>} : memref<64x1152xbf16, #tpu.memory_space<vmem>>, vector<64x128xbf16>,
    %49 = vector.extract_strided_slice %44 {offsets = [1, 0, 0], sizes = [8, 8, 128], strides = [1, 1, 1]} : vector<10x8x128xf32> to vector<8x8x128xf32>
    %50 = vector.shape_cast %49 : vector<8x8x128xf32> to vector<64x128xf32>
    %51 = arith.truncf %50 : vector<64x128xf32> to vector<64x128xbf16>
    %c0_28 = arith.constant 0 : index
    %c640 = arith.constant 640 : index
    %52 = vector.load %arg10[%c0_28, %c640] : memref<64x1152xbf16, #tpu.memory_space<vmem>>, vector<64x128xbf16>
    tpu.vector_store %arg10[%c0_28, %c640], %51 {strides = array<i32>} : memref<64x1152xbf16, #tpu.memory_space<vmem>>, vector<64x128xbf16>,
    %53 = vector.extract_strided_slice %44 {offsets = [2, 0, 0], sizes = [8, 8, 128], strides = [1, 1, 1]} : vector<10x8x128xf32> to vector<8x8x128xf32>
    %54 = vector.shape_cast %53 : vector<8x8x128xf32> to vector<64x128xf32>
    %55 = arith.truncf %54 : vector<64x128xf32> to vector<64x128xbf16>
    %c0_29 = arith.constant 0 : index
    %c1024 = arith.constant 1024 : index
    %56 = vector.load %arg10[%c0_29, %c1024] : memref<64x1152xbf16, #tpu.memory_space<vmem>>, vector<64x128xbf16>
    tpu.vector_store %arg10[%c0_29, %c1024], %55 {strides = array<i32>} : memref<64x1152xbf16, #tpu.memory_space<vmem>>, vector<64x128xbf16>,
    %c0_30 = arith.constant 0 : index
    %c0_31 = arith.constant 0 : index
    %57 = vector.load %arg10[%c0_30, %c0_31] : memref<64x1152xbf16, #tpu.memory_space<vmem>>, vector<64x1152xbf16>
    %c0_32 = arith.constant 0 : index
    %c0_33 = arith.constant 0 : index
    %58 = vector.load %arg3[%c0_32, %c0_33] : memref<1152x128xbf16, #tpu.memory_space<vmem>>, vector<1152x128xbf16>
    %cst_34 = arith.constant dense<0.000000e+00> : vector<64x128xf32>
    %59 = tpu.matmul %57, %58, %cst_34 {dimension_numbers = #tpu.dot_dimension_numbers<[1], [0], [0], [1], [0, 0, 1, 1], [], []>} : vector<64x1152xbf16>, vector<1152x128xbf16>, vector<64x128xf32> -> vector<64x128xf32>
    %60 = vector.extract_strided_slice %0 {offsets = [1, 0], sizes = [1, 128], strides = [1, 1]} : vector<8x128xf32> to vector<1x128xf32>
    %61 = vector.broadcast %60 : vector<1x128xf32> to vector<64x128xf32>
    %62 = arith.addf %59, %61 : vector<64x128xf32>
    %63 = arith.negf %62 : vector<64x128xf32>
    %64 = math.exp %63 : vector<64x128xf32>
    %cst_35 = arith.constant 1.000000e+00 : f32
    %65 = vector.broadcast %cst_35 : f32 to vector<64x128xf32>
    %66 = arith.addf %65, %64 : vector<64x128xf32>
    %67 = arith.divf %65, %66 : vector<64x128xf32>
    %68 = arith.mulf %62, %67 : vector<64x128xf32>
    %69 = arith.truncf %68 : vector<64x128xf32> to vector<64x128xbf16>
    %c0_36 = arith.constant 0 : index
    %c0_37 = arith.constant 0 : index
    %70 = vector.load %arg4[%c0_36, %c0_37] : memref<128x128xbf16, #tpu.memory_space<vmem>>, vector<128x128xbf16>
    %cst_38 = arith.constant dense<0.000000e+00> : vector<64x128xf32>
    %71 = tpu.matmul %69, %70, %cst_38 {dimension_numbers = #tpu.dot_dimension_numbers<[1], [0], [0], [1], [0, 0, 1, 1], [], []>} : vector<64x128xbf16>, vector<128x128xbf16>, vector<64x128xf32> -> vector<64x128xf32>
    %72 = vector.extract_strided_slice %0 {offsets = [2, 0], sizes = [1, 128], strides = [1, 1]} : vector<8x128xf32> to vector<1x128xf32>
    %73 = vector.broadcast %72 : vector<1x128xf32> to vector<64x128xf32>
    %74 = arith.addf %71, %73 : vector<64x128xf32>
    %c0_39 = arith.constant 0 : index
    %c0_40 = arith.constant 0 : index
    %75 = vector.load %arg11[%c0_39, %c0_40] : memref<64x128xf32, #tpu.memory_space<vmem>>, vector<64x128xf32>
    %76 = arith.addf %74, %75 : vector<64x128xf32>
    %77 = arith.truncf %76 : vector<64x128xf32> to vector<64x128xbf16>
    %c0_41 = arith.constant 0 : index
    %c0_42 = arith.constant 0 : index
    %78 = vector.load %arg5[%c0_41, %c0_42] : memref<128x128xbf16, #tpu.memory_space<vmem>>, vector<128x128xbf16>
    %cst_43 = arith.constant dense<0.000000e+00> : vector<64x128xf32>
    %79 = tpu.matmul %77, %78, %cst_43 {dimension_numbers = #tpu.dot_dimension_numbers<[1], [0], [0], [1], [0, 0, 1, 1], [], []>} : vector<64x128xbf16>, vector<128x128xbf16>, vector<64x128xf32> -> vector<64x128xf32>
    %80 = vector.extract_strided_slice %0 {offsets = [3, 0], sizes = [1, 128], strides = [1, 1]} : vector<8x128xf32> to vector<1x128xf32>
    %81 = vector.broadcast %80 : vector<1x128xf32> to vector<64x128xf32>
    %82 = arith.addf %79, %81 : vector<64x128xf32>
    %83 = arith.negf %82 : vector<64x128xf32>
    %84 = math.exp %83 : vector<64x128xf32>
    %cst_44 = arith.constant 1.000000e+00 : f32
    %85 = vector.broadcast %cst_44 : f32 to vector<64x128xf32>
    %86 = arith.addf %85, %84 : vector<64x128xf32>
    %87 = arith.divf %85, %86 : vector<64x128xf32>
    %88 = arith.mulf %82, %87 : vector<64x128xf32>
    %cst_45 = arith.constant dense<0.000000e+00> : vector<128xf32>
    %89 = vector.multi_reduction <add>, %88, %cst_45 [0] : vector<64x128xf32> to vector<128xf32>
    %90 = vector.shape_cast %89 : vector<128xf32> to vector<1x128xf32>
    %cst_46 = arith.constant 6.400000e+01 : f32
    %91 = vector.broadcast %cst_46 : f32 to vector<1x128xf32>
    %92 = arith.divf %90, %91 : vector<1x128xf32>
    %93 = arith.truncf %92 : vector<1x128xf32> to vector<1x128xbf16>
    %c0_47 = arith.constant 0 : index
    %c0_48 = arith.constant 0 : index
    %94 = vector.load %arg6[%c0_47, %c0_48] : memref<128x128xbf16, #tpu.memory_space<vmem>>, vector<128x128xbf16>
    %cst_49 = arith.constant dense<0.000000e+00> : vector<1x128xf32>
    %95 = tpu.matmul %93, %94, %cst_49 {dimension_numbers = #tpu.dot_dimension_numbers<[1], [0], [0], [1], [0, 0, 1, 1], [], []>} : vector<1x128xbf16>, vector<128x128xbf16>, vector<1x128xf32> -> vector<1x128xf32>
    %96 = vector.extract_strided_slice %0 {offsets = [4, 0], sizes = [1, 128], strides = [1, 1]} : vector<8x128xf32> to vector<1x128xf32>
    %97 = arith.addf %95, %96 : vector<1x128xf32>
    %98 = vector.shape_cast %97 : vector<1x128xf32> to vector<1x1x128xf32>
    %c0_50 = arith.constant 0 : index
    %c0_51 = arith.constant 0 : index
    %c0_52 = arith.constant 0 : index
    %99 = vector.load %arg8[%c0_50, %c0_51, %c0_52] : memref<1x1x128xf32, #tpu.memory_space<vmem>>, vector<1x1x128xf32>
    tpu.vector_store %arg8[%c0_50, %c0_51, %c0_52], %98 {strides = array<i32>} : memref<1x1x128xf32, #tpu.memory_space<vmem>>, vector<1x1x128xf32>,
    return
  }
  func.func @transform_0(%arg0: i32) -> (i32, i32) {
    %c0_i32 = arith.constant 0 : i32
    %c0_i32_0 = arith.constant 0 : i32
    return %arg0, %c0_i32 : i32, i32
  }
  func.func @transform_1(%arg0: i32) -> (i32, i32) {
    %c0_i32 = arith.constant 0 : i32
    %c0_i32_0 = arith.constant 0 : i32
    %c0_i32_1 = arith.constant 0 : i32
    return %c0_i32, %c0_i32_0 : i32, i32
  }
  func.func @transform_2(%arg0: i32) -> (i32, i32) {
    %c0_i32 = arith.constant 0 : i32
    %c0_i32_0 = arith.constant 0 : i32
    %c0_i32_1 = arith.constant 0 : i32
    return %c0_i32, %c0_i32_0 : i32, i32
  }
  func.func @transform_3(%arg0: i32) -> (i32, i32) {
    %c0_i32 = arith.constant 0 : i32
    %c0_i32_0 = arith.constant 0 : i32
    %c0_i32_1 = arith.constant 0 : i32
    return %c0_i32, %c0_i32_0 : i32, i32
  }
  func.func @transform_4(%arg0: i32) -> (i32, i32) {
    %c0_i32 = arith.constant 0 : i32
    %c0_i32_0 = arith.constant 0 : i32
    %c0_i32_1 = arith.constant 0 : i32
    return %c0_i32, %c0_i32_0 : i32, i32
  }
  func.func @transform_5(%arg0: i32) -> (i32, i32) {
    %c0_i32 = arith.constant 0 : i32
    %c0_i32_0 = arith.constant 0 : i32
    %c0_i32_1 = arith.constant 0 : i32
    return %c0_i32, %c0_i32_0 : i32, i32
  }
  func.func @transform_6(%arg0: i32) -> (i32, i32) {
    %c0_i32 = arith.constant 0 : i32
    %c0_i32_0 = arith.constant 0 : i32
    %c0_i32_1 = arith.constant 0 : i32
    return %c0_i32, %c0_i32_0 : i32, i32
  }
  func.func @transform_7(%arg0: i32) -> (i32, i32, i32) {
    %c0_i32 = arith.constant 0 : i32
    %c0_i32_0 = arith.constant 0 : i32
    %c0_i32_1 = arith.constant 0 : i32
    return %arg0, %c0_i32, %c0_i32_0 : i32, i32, i32
  }
}

</mosaic_0001>

<llo_original>
// kernel: trunk_forward.1
$region0: #{trunk_forward.1}
  #allocation0 [shape = 'u32[]', space=smem, size = 0x4, offset = 0x4, fixed_abs, tag = 'smem constant byte address 0x4 - core index']
  #allocation1 [shape = 'u32[72,128]{1,0:T(1,128)}', space=vmem, size = 0x9000, scoped, tag = 'internal scratch']
  #allocation2 [shape = 'f32[10,24,128]{2,1,0:T(8,128)}', space=vmem, size = 0x1e000, scoped, tag = 'scratch operand']
  #allocation3 [shape = 'bf16[64,1152]{1,0:T(8,128)(2,1)}', space=vmem, size = 0x24000, scoped, tag = 'scratch operand']
  #allocation4 [shape = 'f32[64,128]{1,0:T(8,128)}', space=vmem, size = 0x8000, scoped, tag = 'scratch operand']
  %s0 = inlined_call_operand.vmem [shape: bf16[128,128], index: 0, kind: input, shape index: {}]
  %s1 = inlined_call_operand.vmem [shape: bf16[128,128], index: 1, kind: input, shape index: {}]
  %s2 = inlined_call_operand.vmem [shape: bf16[1152,128], index: 2, kind: input, shape index: {}]
  %s3 = inlined_call_operand.vmem [shape: bf16[128,128], index: 3, kind: input, shape index: {}]
  %s4 = inlined_call_operand.vmem [shape: bf16[128,128], index: 4, kind: input, shape index: {}]
  %s5 = inlined_call_operand.vmem [shape: bf16[128,128], index: 5, kind: input, shape index: {}]
  %s6 = inlined_call_operand.vmem [shape: f32[8,128], index: 6, kind: input, shape index: {}]
  %s7 = inlined_call_operand.hbm [shape: f32[2,1,128], index: 7, kind: output, shape index: {}]
  %s8 = sld [smem:[#allocation0]]
  $region61: #{trunk_forward.1} parent=0
    _
  %s10 = ssub.s32 1, %s8
  %s11 = scalar_select 0, %s10, %s8
  $region1: #{trunk_forward.1} parent=0
    #allocation5 [shape = 'u8[1024]{0}', space=vmem, size = 0x400, scoped, tag = 'output window, operand 0']
    #allocation6 [shape = 's32[2]{0}', space=sflag, size = 0x8, scoped, tag = 'scoped memory for trunk_forward.1']
    %12 = vsyncpa [#allocation6], 0
    %s13 = scalar_lea.sflag [#allocation6], 1
    %14 = vsyncpa %s13, 0
    loop: start=0, step=1, limit=4
    $region2: #{trunk_forward.1} parent=1 // loop_pre_header
      _
    $region3: #{trunk_forward.1} parent=1 // loop_header
      %s16 = sphi 0, %s20
      %p17 = scmp.ge.s32.totalorder %s16, 4
      %s26 = sphi 0, %s28
      %s29 = sphi 0, %s26
      %s30 = sphi 0, %s29
      %s46 = sphi 0, %s30
      %s50 = sphi 0, %s50
      %s52 = sphi 0, %s50
      %s53 = sphi 0, %s52
      %s67 = sphi 0, %s53
      %s71 = sphi 0, %s71
      %s73 = sphi 0, %s71
      %s74 = sphi 0, %s73
      %s88 = sphi 0, %s74
      %s92 = sphi 0, %s92
      %s94 = sphi 0, %s92
      %s95 = sphi 0, %s94
      %s109 = sphi 0, %s95
      %s113 = sphi 0, %s113
      %s115 = sphi 0, %s113
      %s116 = sphi 0, %s115
      %s130 = sphi 0, %s116
      %s134 = sphi 0, %s134
      %s136 = sphi 0, %s134
      %s137 = sphi 0, %s136
      %s151 = sphi 0, %s137
      %s155 = sphi 0, %s155
      %s157 = sphi 0, %s155
      %s158 = sphi 0, %s157
      %s172 = sphi 0, %s158
      %s178 = sphi 0, %s180
      %s181 = sphi 0, %s178
      %s182 = sphi 0, %s181
      %s198 = sphi 0, %s182
    $region4: #{trunk_forward.1} parent=1 // loop_header_branch
      %19 = sbr.rel (%p17) target = $region8
    $region5: #{trunk_forward.1} parent=1 // loop_body
      %s21 = ssub.s32 %s16, 1
      %s22 = ssub.s32 %s16, 2
      %s23 = sadd.s32 %s16, 1
      %s24 = ssub.s32 %s16, %s23
      %p25 = scmp.eq.s32.totalorder %s24, 0
      %s27 = sadd.s32 %s26, 1
      %s28 = scalar_select %p25, %s26, %s27
      %p31 = pneg %p25
      %p32 = scmp.eq.s32.totalorder %s16, 1
      %p33 = por %p31, %p32
      %p34 = scmp.ne.s32.totalorder %s26, %s29
      %p35 = scmp.eq.s32.totalorder %s16, 0
      %p36 = por %p34, %p35
      %p37 = scmp.ne.s32.totalorder %s26, %s29
      %p38 = scmp.eq.s32.totalorder %s21, 1
      %p39 = por %p37, %p38
      %p40 = scmp.ne.s32.totalorder %s29, %s30
      %p41 = scmp.eq.s32.totalorder %s21, 0
      %p42 = por %p40, %p41
      %p43 = scmp.ne.s32.totalorder %s29, %s30
      %p44 = scmp.eq.s32.totalorder %s22, 1
      %p45 = por %p43, %p44
      %p47 = scmp.ne.s32.totalorder %s30, %s46
      %p48 = scmp.eq.s32.totalorder %s22, 0
      %p49 = por %p47, %p48
      %s51 = sadd.s32 %s50, 1
      %p54 = scmp.eq.s32.totalorder %s16, 1
      %p55 = scmp.ne.s32.totalorder %s50, %s52
      %p56 = scmp.eq.s32.totalorder %s16, 0
      %p57 = por %p55, %p56
      %p58 = scmp.ne.s32.totalorder %s50, %s52
      %p59 = scmp.eq.s32.totalorder %s21, 1
      %p60 = por %p58, %p59
      %p61 = scmp.ne.s32.totalorder %s52, %s53
      %p62 = scmp.eq.s32.totalorder %s21, 0
      %p63 = por %p61, %p62
      %p64 = scmp.ne.s32.totalorder %s52, %s53
      %p65 = scmp.eq.s32.totalorder %s22, 1
      %p66 = por %p64, %p65
      %p68 = scmp.ne.s32.totalorder %s53, %s67
      %p69 = scmp.eq.s32.totalorder %s22, 0
      %p70 = por %p68, %p69
      %s72 = sadd.s32 %s71, 1
      %p75 = scmp.eq.s32.totalorder %s16, 1
      %p76 = scmp.ne.s32.totalorder %s71, %s73
      %p77 = scmp.eq.s32.totalorder %s16, 0
      %p78 = por %p76, %p77
      %p79 = scmp.ne.s32.totalorder %s71, %s73
      %p80 = scmp.eq.s32.totalorder %s21, 1
      %p81 = por %p79, %p80
      %p82 = scmp.ne.s32.totalorder %s73, %s74
      %p83 = scmp.eq.s32.totalorder %s21, 0
      %p84 = por %p82, %p83
      %p85 = scmp.ne.s32.totalorder %s73, %s74
      %p86 = scmp.eq.s32.totalorder %s22, 1
      %p87 = por %p85, %p86
      %p89 = scmp.ne.s32.totalorder %s74, %s88
      %p90 = scmp.eq.s32.totalorder %s22, 0
      %p91 = por %p89, %p90
      %s93 = sadd.s32 %s92, 1
      %p96 = scmp.eq.s32.totalorder %s16, 1
      %p97 = scmp.ne.s32.totalorder %s92, %s94
      %p98 = scmp.eq.s32.totalorder %s16, 0
      %p99 = por %p97, %p98
      %p100 = scmp.ne.s32.totalorder %s92, %s94
      %p101 = scmp.eq.s32.totalorder %s21, 1
      %p102 = por %p100, %p101
      %p103 = scmp.ne.s32.totalorder %s94, %s95
      %p104 = scmp.eq.s32.totalorder %s21, 0
      %p105 = por %p103, %p104
      %p106 = scmp.ne.s32.totalorder %s94, %s95
      %p107 = scmp.eq.s32.totalorder %s22, 1
      %p108 = por %p106, %p107
      %p110 = scmp.ne.s32.totalorder %s95, %s109
      %p111 = scmp.eq.s32.totalorder %s22, 0
      %p112 = por %p110, %p111
      %s114 = sadd.s32 %s113, 1
      %p117 = scmp.eq.s32.totalorder %s16, 1
      %p118 = scmp.ne.s32.totalorder %s113, %s115
      %p119 = scmp.eq.s32.totalorder %s16, 0
      %p120 = por %p118, %p119
      %p121 = scmp.ne.s32.totalorder %s113, %s115
      %p122 = scmp.eq.s32.totalorder %s21, 1
      %p123 = por %p121, %p122
      %p124 = scmp.ne.s32.totalorder %s115, %s116
      %p125 = scmp.eq.s32.totalorder %s21, 0
      %p126 = por %p124, %p125
      %p127 = scmp.ne.s32.totalorder %s115, %s116
      %p128 = scmp.eq.s32.totalorder %s22, 1
      %p129 = por %p127, %p128
      %p131 = scmp.ne.s32.totalorder %s116, %s130
      %p132 = scmp.eq.s32.totalorder %s22, 0
      %p133 = por %p131, %p132
      %s135 = sadd.s32 %s134, 1
      %p138 = scmp.eq.s32.totalorder %s16, 1
      %p139 = scmp.ne.s32.totalorder %s134, %s136
      %p140 = scmp.eq.s32.totalorder %s16, 0
      %p141 = por %p139, %p140
      %p142 = scmp.ne.s32.totalorder %s134, %s136
      %p143 = scmp.eq.s32.totalorder %s21, 1
      %p144 = por %p142, %p143
      %p145 = scmp.ne.s32.totalorder %s136, %s137
      %p146 = scmp.eq.s32.totalorder %s21, 0
      %p147 = por %p145, %p146
      %p148 = scmp.ne.s32.totalorder %s136, %s137
      %p149 = scmp.eq.s32.totalorder %s22, 1
      %p150 = por %p148, %p149
      %p152 = scmp.ne.s32.totalorder %s137, %s151
      %p153 = scmp.eq.s32.totalorder %s22, 0
      %p154 = por %p152, %p153
      %s156 = sadd.s32 %s155, 1
      %p159 = scmp.eq.s32.totalorder %s16, 1
      %p160 = scmp.ne.s32.totalorder %s155, %s157
      %p161 = scmp.eq.s32.totalorder %s16, 0
      %p162 = por %p160, %p161
      %p163 = scmp.ne.s32.totalorder %s155, %s157
      %p164 = scmp.eq.s32.totalorder %s21, 1
      %p165 = por %p163, %p164
      %p166 = scmp.ne.s32.totalorder %s157, %s158
      %p167 = scmp.eq.s32.totalorder %s21, 0
      %p168 = por %p166, %p167
      %p169 = scmp.ne.s32.totalorder %s157, %s158
      %p170 = scmp.eq.s32.totalorder %s22, 1
      %p171 = por %p169, %p170
      %p173 = scmp.ne.s32.totalorder %s158, %s172
      %p174 = scmp.eq.s32.totalorder %s22, 0
      %p175 = por %p173, %p174
      %s176 = ssub.s32 %s16, %s23
      %p177 = scmp.eq.s32.totalorder %s176, 0
      %s179 = sadd.s32 %s178, 1
      %s180 = scalar_select %p177, %s178, %s179
      %p183 = pneg %p177
      %p184 = scmp.eq.s32.totalorder %s16, 1
      %p185 = por %p183, %p184
      %p186 = scmp.ne.s32.totalorder %s178, %s181
      %p187 = scmp.eq.s32.totalorder %s16, 0
      %p188 = por %p186, %p187
      %p189 = scmp.ne.s32.totalorder %s178, %s181
      %p190 = scmp.eq.s32.totalorder %s21, 1
      %p191 = por %p189, %p190
      %p192 = scmp.ne.s32.totalorder %s181, %s182
      %p193 = scmp.eq.s32.totalorder %s21, 0
      %p194 = por %p192, %p193
      %p195 = scmp.ne.s32.totalorder %s181, %s182
      %p196 = scmp.eq.s32.totalorder %s22, 1
      %p197 = por %p195, %p196
      %p199 = scmp.ne.s32.totalorder %s182, %s198
      %p200 = scmp.eq.s32.totalorder %s22, 0
      %p201 = por %p199, %p200
      %p202 = scmp.le.s32.totalorder 1, %s16
      %p203 = scmp.lt.s32.totalorder %s16, 3
      %p204 = pnand %p202, %p203
      %p205 = pneg %p204
      // Predicated region
      $region9: #{trunk_forward.1} parent=5 // pred_check
        _
      $region10: #{trunk_forward.1} parent=5 // pred_check_branch
        %207 = sbr.rel (%p204) target = $region12
      $region11: #{trunk_forward.1} parent=5 // pred_region
        %s208 = ssub.s32 %s16, 1
        // Predicated region
        $region13: #{trunk_forward.1} parent=11 // pred_check
          %p209 = pneg %p63
        $region14: #{trunk_forward.1} parent=11 // pred_check_branch
          %211 = sbr.rel (%p209) target = $region16
        $region15: #{trunk_forward.1} parent=11 // pred_region
          _
        $region16: #{trunk_forward.1} parent=11 // pred_fallthru
          _
        // Predicated region
        $region17: #{trunk_forward.1} parent=11 // pred_check
          %p212 = pneg %p84
        $region18: #{trunk_forward.1} parent=11 // pred_check_branch
          %214 = sbr.rel (%p212) target = $region20
        $region19: #{trunk_forward.1} parent=11 // pred_region
          _
        $region20: #{trunk_forward.1} parent=11 // pred_fallthru
          _
        // Predicated region
        $region21: #{trunk_forward.1} parent=11 // pred_check
          %p215 = pneg %p105
        $region22: #{trunk_forward.1} parent=11 // pred_check_branch
          %217 = sbr.rel (%p215) target = $region24
        $region23: #{trunk_forward.1} parent=11 // pred_region
          _
        $region24: #{trunk_forward.1} parent=11 // pred_fallthru
          _
        // Predicated region
        $region25: #{trunk_forward.1} parent=11 // pred_check
          %p218 = pneg %p126
        $region26: #{trunk_forward.1} parent=11 // pred_check_branch
          %220 = sbr.rel (%p218) target = $region28
        $region27: #{trunk_forward.1} parent=11 // pred_region
          _
        $region28: #{trunk_forward.1} parent=11 // pred_fallthru
          _
        // Predicated region
        $region29: #{trunk_forward.1} parent=11 // pred_check
          %p221 = pneg %p147
        $region30: #{trunk_forward.1} parent=11 // pred_check_branch
          %223 = sbr.rel (%p221) target = $region32
        $region31: #{trunk_forward.1} parent=11 // pred_region
          _
        $region32: #{trunk_forward.1} parent=11 // pred_fallthru
          _
        // Predicated region
        $region33: #{trunk_forward.1} parent=11 // pred_check
          %p224 = pneg %p168
        $region34: #{trunk_forward.1} parent=11 // pred_check_branch
          %226 = sbr.rel (%p224) target = $region36
        $region35: #{trunk_forward.1} parent=11 // pred_region
          _
        $region36: #{trunk_forward.1} parent=11 // pred_fallthru
          _
      $region12: #{trunk_forward.1} parent=5 // pred_fallthru
        _
      %p227 = scmp.lt.s32.totalorder %s16, 2
      // Predicated region
      $region37: #{trunk_forward.1} parent=5 // pred_check
        %p228 = pneg %p227
      $region38: #{trunk_forward.1} parent=5 // pred_check_branch
        %230 = sbr.rel (%p228) target = $region40
      $region39: #{trunk_forward.1} parent=5 // pred_region
        // Predicated region
        $region41: #{trunk_forward.1} parent=39 // pred_check
          %p231 = pneg %p36
        $region42: #{trunk_forward.1} parent=39 // pred_check_branch
          %233 = sbr.rel (%p231) target = $region44
        $region43: #{trunk_forward.1} parent=39 // pred_region
          %s234 = smul.u32 8, %s16
          %p235 = scmp.lt.s32.totalorder %s234, 15
          %s236 = scalar_select %p235, %s234, 15
          %s237 = smul.addr %s236, 4
          %s238 = scalar_lea.vmem %s0, %s237
          %s239 = smul.u32 8, %s16
        $region44: #{trunk_forward.1} parent=39 // pred_fallthru
          _
      $region40: #{trunk_forward.1} parent=5 // pred_fallthru
        _
      %p240 = scmp.le.s32.totalorder 1, %s16
      %p241 = scmp.lt.s32.totalorder %s16, 3
      %p242 = pnand %p240, %p241
      %p243 = pneg %p242
      // Predicated region
      $region45: #{trunk_forward.1} parent=5 // pred_check
        _
      $region46: #{trunk_forward.1} parent=5 // pred_check_branch
        %245 = sbr.rel (%p242) target = $region48
      $region47: #{trunk_forward.1} parent=5 // pred_region
        %s246 = ssub.s32 %s16, 1
        %s247 = smul.u32 8, %s21
        %p248 = scmp.lt.s32.totalorder %s247, 15
        %s249 = scalar_select %p248, %s247, 15
        %s250 = smul.addr %s249, 4
        %s251 = scalar_lea.vmem %s0, %s250
        %p252 = pneg %p42
        %p253 = pneg %p39
        %p254 = pneg %p63
        %p255 = pneg %p60
        %p256 = pneg %p84
        %p257 = pneg %p81
        %p258 = pneg %p105
        %p259 = pneg %p102
        %p260 = pneg %p126
        %p261 = pneg %p123
        %p262 = pneg %p147
        %p263 = pneg %p144
        %p264 = pneg %p168
        %p265 = pneg %p165
        %p266 = pneg %p194
        %p267 = pneg %p191
        %s268 = sand.u32 %s181, 1
        %s269 = scalar_lea.sflag [#allocation6], %s268
        %s270 = sand.u32 %s181, 1
        %s271 = scalar_lea.vmem [#allocation5], %s270
        %s272 = smul.u32 8, %s21
        %p273 = scmp.lt.s32.totalorder %s272, 15
        %s274 = scalar_select %p273, %s272, 15
        %s275 = smul.addr %s274, 4
        %s276 = scalar_lea.vmem %s0, %s275
        %s277 = smul.u32 8, %s21
        %v278 = vld [vmem:[%s6] sm:$0xff]
        %v279 = vld [vmem:[%s276] sm:$0xf]
        %v280 = vld [vmem:[%s276 + $0x4] sm:$0xf]
        %v281 = vld [vmem:[%s276 + $0x8] sm:$0xf]
        %v282 = vld [vmem:[%s276 + $0xc] sm:$0xf]
        %v283 = vld [vmem:[%s276 + $0x10] sm:$0xf]
        %v284 = vld [vmem:[%s276 + $0x14] sm:$0xf]
        %v285 = vld [vmem:[%s276 + $0x18] sm:$0xf]
        %v286 = vld [vmem:[%s276 + $0x1c] sm:$0xf]
        %v287 = vld [vmem:[%s1] sm:$0xf]
        %v288 = vld [vmem:[%s1 + $0x4] sm:$0xf]
        %v289 = vld [vmem:[%s1 + $0x8] sm:$0xf]
        %v290 = vld [vmem:[%s1 + $0xc] sm:$0xf]
        %v291 = vld [vmem:[%s1 + $0x10] sm:$0xf]
        %v292 = vld [vmem:[%s1 + $0x14] sm:$0xf]
        %v293 = vld [vmem:[%s1 + $0x18] sm:$0xf]
        %v294 = vld [vmem:[%s1 + $0x1c] sm:$0xf]
        %v295 = vld [vmem:[%s1 + $0x20] sm:$0xf]
        %v296 = vld [vmem:[%s1 + $0x24] sm:$0xf]
        %v297 = vld [vmem:[%s1 + $0x28] sm:$0xf]
        %v298 = vld [vmem:[%s1 + $0x2c] sm:$0xf]
        %v299 = vld [vmem:[%s1 + $0x30] sm:$0xf]
        %v300 = vld [vmem:[%s1 + $0x34] sm:$0xf]
        %v301 = vld [vmem:[%s1 + $0x38] sm:$0xf]
        %v302 = vld [vmem:[%s1 + $0x3c] sm:$0xf]
        %v303 = vperm.slane %v278, 0
        %v312 = vunpack.c.l.b16 %v279
        %v313 = vunpack.c.l.b16 %v280
        %v314 = vunpack.c.l.b16 %v281
        %v315 = vunpack.c.l.b16 %v282
        %v316 = vunpack.c.l.b16 %v283
        %v317 = vunpack.c.l.b16 %v284
        %v318 = vunpack.c.l.b16 %v285
        %v319 = vunpack.c.l.b16 %v286
        %v320 = vpack.c.b16 %v313, %v312
        %v321 = vpack.c.b16 %v315, %v314
        %v322 = vpack.c.b16 %v317, %v316
        %v323 = vpack.c.b16 %v319, %v318
        %v344 = vunpack.c.l.b16 %v287
        %v345 = vunpack.c.l.b16 %v288
        %v346 = vunpack.c.l.b16 %v289
        %v347 = vunpack.c.l.b16 %v290
        %v348 = vunpack.c.l.b16 %v291
        %v349 = vunpack.c.l.b16 %v292
        %v350 = vunpack.c.l.b16 %v293
        %v351 = vunpack.c.l.b16 %v294
        %v352 = vunpack.c.l.b16 %v295
        %v353 = vunpack.c.l.b16 %v296
        %v354 = vunpack.c.l.b16 %v297
        %v355 = vunpack.c.l.b16 %v298
        %v356 = vunpack.c.l.b16 %v299
        %v357 = vunpack.c.l.b16 %v300
        %v358 = vunpack.c.l.b16 %v301
        %v359 = vunpack.c.l.b16 %v302
        %v360 = vpack.c.b16 %v345, %v344
        %v361 = vpack.c.b16 %v347, %v346
        %v362 = vpack.c.b16 %v349, %v348
        %v363 = vpack.c.b16 %v351, %v350
        %v364 = vpack.c.b16 %v353, %v352
        %v365 = vpack.c.b16 %v355, %v354
        %v366 = vpack.c.b16 %v357, %v356
        %v367 = vpack.c.b16 %v359, %v358
        %376 = vmatpush.bf16.msra.mxu0 %v367
        %377 = vmatpush.bf16.msra.mxu0 %v366
        %378 = vmatpush.bf16.msra.mxu0 %v365
        %379 = vmatpush.bf16.msra.mxu0 %v364
        %380 = vmatpush.bf16.msra.mxu0 %v363
        %381 = vmatpush.bf16.msra.mxu0 %v362
        %382 = vmatpush.bf16.msra.mxu0 %v361
        %383 = vmatpush.bf16.msra.mxu0 %v360
        %384 = vmatmul.bf16.gmra.mxu0 %v320
        %v385 = vpop.f32.mrf.mxu0
        %v386 = vadd.f32 %v303, %v385
        %v387 = vpop.f32.mrf.mxu0
        %v388 = vadd.f32 %v303, %v387
        %389 = vmatmul.bf16.gmra.mxu0 %v321
        %v390 = vpop.f32.mrf.mxu0
        %v391 = vadd.f32 %v303, %v390
        %v392 = vpop.f32.mrf.mxu0
        %v393 = vadd.f32 %v303, %v392
        %394 = vmatmul.bf16.gmra.mxu0 %v322
        %v395 = vpop.f32.mrf.mxu0
        %v396 = vadd.f32 %v303, %v395
        %v397 = vpop.f32.mrf.mxu0
        %v398 = vadd.f32 %v303, %v397
        %399 = vmatmul.bf16.gmra.mxu0 %v323
        %v400 = vpop.f32.mrf.mxu0
        %v401 = vadd.f32 %v303, %v400
        %v402 = vpop.f32.mrf.mxu0
        %v403 = vadd.f32 %v303, %v402
        %404 = vdwg.mxu0
        %v405 = vxor.u32 %v386, 2147483648
        %v406 = vxor.u32 %v388, 2147483648
        %v407 = vxor.u32 %v391, 2147483648
        %v408 = vxor.u32 %v393, 2147483648
        %v409 = vxor.u32 %v396, 2147483648
        %v410 = vxor.u32 %v398, 2147483648
        %v411 = vxor.u32 %v401, 2147483648
        %v412 = vxor.u32 %v403, 2147483648
        %v413 = vmul.f32 %v405, 1.442695
        %v414 = vpow.pop %v413
        %v415 = vmul.f32 %v406, 1.442695
        %v416 = vpow.pop %v415
        %v417 = vmul.f32 %v407, 1.442695
        %v418 = vpow.pop %v417
        %v419 = vmul.f32 %v408, 1.442695
        %v420 = vpow.pop %v419
        %v421 = vmul.f32 %v409, 1.442695
        %v422 = vpow.pop %v421
        %v423 = vmul.f32 %v410, 1.442695
        %v424 = vpow.pop %v423
        %v425 = vmul.f32 %v411, 1.442695
        %v426 = vpow.pop %v425
        %v427 = vmul.f32 %v412, 1.442695
        %v428 = vpow.pop %v427
        %v429 = vadd.f32 %v414, 1.0
        %v430 = vadd.f32 %v416, 1.0
        %v431 = vadd.f32 %v418, 1.0
        %v432 = vadd.f32 %v420, 1.0
        %v433 = vadd.f32 %v422, 1.0
        %v434 = vadd.f32 %v424, 1.0
        %v435 = vadd.f32 %v426, 1.0
        %v436 = vadd.f32 %v428, 1.0
        %v437 = vrcp.pop %v429
        %v438 = vmul.f32 %v429, %v437
        %v439 = vsub.f32 1.0, %v438
        %v440 = vmul.f32 %v437, %v439
        %v441 = vadd.f32 %v437, %v440
        %vm442 = vweird.f32 %v429
        %vm443 = vweird.f32 %v437
        %vm444 = vmor %vm442, %vm443
        %v445 = vsel %vm444, %v437, %v441
        %v446 = vand.u32 2147483647, %v429
        %vm447 = vcmp.eq.f32.partialorder %v446, 8.507059e+37
        %v448 = vand.u32 %v429, 2147483648
        %v449 = vor.u32 1.1754944e-38, %v448
        %v450 = vsel %vm447, %v449, %v445
        %v451 = vmul.f32 1.0, %v450
        %v452 = vrcp.pop %v430
        %v453 = vmul.f32 %v430, %v452
        %v454 = vsub.f32 1.0, %v453
        %v455 = vmul.f32 %v452, %v454
        %v456 = vadd.f32 %v452, %v455
        %vm457 = vweird.f32 %v430
        %vm458 = vweird.f32 %v452
        %vm459 = vmor %vm457, %vm458
        %v460 = vsel %vm459, %v452, %v456
        %v461 = vand.u32 2147483647, %v430
        %vm462 = vcmp.eq.f32.partialorder %v461, 8.507059e+37
        %v463 = vand.u32 %v430, 2147483648
        %v464 = vor.u32 1.1754944e-38, %v463
        %v465 = vsel %vm462, %v464, %v460
        %v466 = vmul.f32 1.0, %v465
        %v467 = vrcp.pop %v431
        %v468 = vmul.f32 %v431, %v467
        %v469 = vsub.f32 1.0, %v468
        %v470 = vmul.f32 %v467, %v469
        %v471 = vadd.f32 %v467, %v470
        %vm472 = vweird.f32 %v431
        %vm473 = vweird.f32 %v467
        %vm474 = vmor %vm472, %vm473
        %v475 = vsel %vm474, %v467, %v471
        %v476 = vand.u32 2147483647, %v431
        %vm477 = vcmp.eq.f32.partialorder %v476, 8.507059e+37
        %v478 = vand.u32 %v431, 2147483648
        %v479 = vor.u32 1.1754944e-38, %v478
        %v480 = vsel %vm477, %v479, %v475
        %v481 = vmul.f32 1.0, %v480
        %v482 = vrcp.pop %v432
        %v483 = vmul.f32 %v432, %v482
        %v484 = vsub.f32 1.0, %v483
        %v485 = vmul.f32 %v482, %v484
        %v486 = vadd.f32 %v482, %v485
        %vm487 = vweird.f32 %v432
        %vm488 = vweird.f32 %v482
        %vm489 = vmor %vm487, %vm488
        %v490 = vsel %vm489, %v482, %v486
        %v491 = vand.u32 2147483647, %v432
        %vm492 = vcmp.eq.f32.partialorder %v491, 8.507059e+37
        %v493 = vand.u32 %v432, 2147483648
        %v494 = vor.u32 1.1754944e-38, %v493
        %v495 = vsel %vm492, %v494, %v490
        %v496 = vmul.f32 1.0, %v495
        %v497 = vrcp.pop %v433
        %v498 = vmul.f32 %v433, %v497
        %v499 = vsub.f32 1.0, %v498
        %v500 = vmul.f32 %v497, %v499
        %v501 = vadd.f32 %v497, %v500
        %vm502 = vweird.f32 %v433
        %vm503 = vweird.f32 %v497
        %vm504 = vmor %vm502, %vm503
        %v505 = vsel %vm504, %v497, %v501
        %v506 = vand.u32 2147483647, %v433
        %vm507 = vcmp.eq.f32.partialorder %v506, 8.507059e+37
        %v508 = vand.u32 %v433, 2147483648
        %v509 = vor.u32 1.1754944e-38, %v508
        %v510 = vsel %vm507, %v509, %v505
        %v511 = vmul.f32 1.0, %v510
        %v512 = vrcp.pop %v434
        %v513 = vmul.f32 %v434, %v512
        %v514 = vsub.f32 1.0, %v513
        %v515 = vmul.f32 %v512, %v514
        %v516 = vadd.f32 %v512, %v515
        %vm517 = vweird.f32 %v434
        %vm518 = vweird.f32 %v512
        %vm519 = vmor %vm517, %vm518
        %v520 = vsel %vm519, %v512, %v516
        %v521 = vand.u32 2147483647, %v434
        %vm522 = vcmp.eq.f32.partialorder %v521, 8.507059e+37
        %v523 = vand.u32 %v434, 2147483648
        %v524 = vor.u32 1.1754944e-38, %v523
        %v525 = vsel %vm522, %v524, %v520
        %v526 = vmul.f32 1.0, %v525
        %v527 = vrcp.pop %v435
        %v528 = vmul.f32 %v435, %v527
        %v529 = vsub.f32 1.0, %v528
        %v530 = vmul.f32 %v527, %v529
        %v531 = vadd.f32 %v527, %v530
        %vm532 = vweird.f32 %v435
        %vm533 = vweird.f32 %v527
        %vm534 = vmor %vm532, %vm533
        %v535 = vsel %vm534, %v527, %v531
        %v536 = vand.u32 2147483647, %v435
        %vm537 = vcmp.eq.f32.partialorder %v536, 8.507059e+37
        %v538 = vand.u32 %v435, 2147483648
        %v539 = vor.u32 1.1754944e-38, %v538
        %v540 = vsel %vm537, %v539, %v535
        %v541 = vmul.f32 1.0, %v540
        %v542 = vrcp.pop %v436
        %v543 = vmul.f32 %v436, %v542
        %v544 = vsub.f32 1.0, %v543
        %v545 = vmul.f32 %v542, %v544
        %v546 = vadd.f32 %v542, %v545
        %vm547 = vweird.f32 %v436
        %vm548 = vweird.f32 %v542
        %vm549 = vmor %vm547, %vm548
        %v550 = vsel %vm549, %v542, %v546
        %v551 = vand.u32 2147483647, %v436
        %vm552 = vcmp.eq.f32.partialorder %v551, 8.507059e+37
        %v553 = vand.u32 %v436, 2147483648
        %v554 = vor.u32 1.1754944e-38, %v553
        %v555 = vsel %vm552, %v554, %v550
        %v556 = vmul.f32 1.0, %v555
        %v557 = vmul.f32 %v386, %v451
        %v558 = vmul.f32 %v388, %v466
        %v559 = vmul.f32 %v391, %v481
        %v560 = vmul.f32 %v393, %v496
        %v561 = vmul.f32 %v396, %v511
        %v562 = vmul.f32 %v398, %v526
        %v563 = vmul.f32 %v401, %v541
        %v564 = vmul.f32 %v403, %v556
        %565 = vst [vmem:[#allocation4] sm:$0xff] %v557
        %566 = vst [vmem:[#allocation4 + $0x8] sm:$0xff] %v558
        %567 = vst [vmem:[#allocation4 + $0x10] sm:$0xff] %v559
        %568 = vst [vmem:[#allocation4 + $0x18] sm:$0xff] %v560
        %569 = vst [vmem:[#allocation4 + $0x20] sm:$0xff] %v561
        %570 = vst [vmem:[#allocation4 + $0x28] sm:$0xff] %v562
        %571 = vst [vmem:[#allocation4 + $0x30] sm:$0xff] %v563
        %572 = vst [vmem:[#allocation4 + $0x38] sm:$0xff] %v564
        %573 = vst [vmem:[#allocation2] sm:$0xff] 0.0
        %574 = vst [vmem:[#allocation2 + $0x8] sm:$0xff] 0.0
        %575 = vst [vmem:[#allocation2 + $0x10] sm:$0xff] 0.0
        %576 = vst [vmem:[#allocation2 + $0x18] sm:$0xff] 0.0
        %577 = vst [vmem:[#allocation2 + $0x20] sm:$0xff] 0.0
        %578 = vst [vmem:[#allocation2 + $0x28] sm:$0xff] 0.0
        %579 = vst [vmem:[#allocation2 + $0x30] sm:$0xff] 0.0
        %580 = vst [vmem:[#allocation2 + $0x38] sm:$0xff] 0.0
        %581 = vst [vmem:[#allocation2 + $0x40] sm:$0xff] 0.0
        %582 = vst [vmem:[#allocation2 + $0x48] sm:$0xff] 0.0
        %583 = vst [vmem:[#allocation2 + $0x50] sm:$0xff] 0.0
        %584 = vst [vmem:[#allocation2 + $0x58] sm:$0xff] 0.0
        %585 = vst [vmem:[#allocation2 + $0x60] sm:$0xff] 0.0
        %586 = vst [vmem:[#allocation2 + $0x68] sm:$0xff] 0.0
        %587 = vst [vmem:[#allocation2 + $0x70] sm:$0xff] 0.0
        %588 = vst [vmem:[#allocation2 + $0x78] sm:$0xff] 0.0
        %589 = vst [vmem:[#allocation2 + $0x80] sm:$0xff] 0.0
        %590 = vst [vmem:[#allocation2 + $0x88] sm:$0xff] 0.0
        %591 = vst [vmem:[#allocation2 + $0x90] sm:$0xff] 0.0
        %592 = vst [vmem:[#allocation2 + $0x98] sm:$0xff] 0.0
        %593 = vst [vmem:[#allocation2 + $0xa0] sm:$0xff] 0.0
        %594 = vst [vmem:[#allocation2 + $0xa8] sm:$0xff] 0.0
        %595 = vst [vmem:[#allocation2 + $0xb0] sm:$0xff] 0.0
        %596 = vst [vmem:[#allocation2 + $0xb8] sm:$0xff] 0.0
        %597 = vst [vmem:[#allocation2 + $0xc0] sm:$0xff] 0.0
        %598 = vst [vmem:[#allocation2 + $0xc8] sm:$0xff] 0.0
        %599 = vst [vmem:[#allocation2 + $0xd0] sm:$0xff] 0.0
        %600 = vst [vmem:[#allocation2 + $0xd8] sm:$0xff] 0.0
        %601 = vst [vmem:[#allocation2 + $0xe0] sm:$0xff] 0.0
        %602 = vst [vmem:[#allocation2 + $0xe8] sm:$0xff] 0.0
        %s603 = scalar_lea.vmem [#allocation2], 24
        %604 = vst [vmem:[%s603 + $0x8] sm:$0xff] %v557
        %605 = vst [vmem:[%s603 + $0x20] sm:$0xff] %v558
        %606 = vst [vmem:[%s603 + $0x38] sm:$0xff] %v559
        %607 = vst [vmem:[%s603 + $0x50] sm:$0xff] %v560
        %608 = vst [vmem:[%s603 + $0x68] sm:$0xff] %v561
        %609 = vst [vmem:[%s603 + $0x80] sm:$0xff] %v562
        %610 = vst [vmem:[%s603 + $0x98] sm:$0xff] %v563
        %611 = vst [vmem:[%s603 + $0xb0] sm:$0xff] %v564
        %v612 = vld [vmem:[#allocation2 + $0x7] sm:$0xff]
        %v613 = vld [vmem:[#allocation2 + $0x1f] sm:$0xff]
        %v614 = vld [vmem:[#allocation2 + $0x37] sm:$0xff]
        %v615 = vld [vmem:[#allocation2 + $0x4f] sm:$0xff]
        %v616 = vld [vmem:[#allocation2 + $0x67] sm:$0xff]
        %v617 = vld [vmem:[#allocation2 + $0x7f] sm:$0xff]
        %v618 = vld [vmem:[#allocation2 + $0x97] sm:$0xff]
        %v619 = vld [vmem:[#allocation2 + $0xaf] sm:$0xff]
        %v620 = vld [vmem:[#allocation2 + $0xc7] sm:$0xff]
        %v621 = vld [vmem:[#allocation2 + $0xdf] sm:$0xff]
        %v622 = vpack.c.bf16 %v612, %v612
        %v623 = vpack.c.bf16 %v613, %v613
        %v624 = vpack.c.bf16 %v614, %v614
        %v625 = vpack.c.bf16 %v615, %v615
        %v626 = vpack.c.bf16 %v616, %v616
        %v627 = vpack.c.bf16 %v617, %v617
        %v628 = vpack.c.bf16 %v618, %v618
        %v629 = vpack.c.bf16 %v619, %v619
        %630 = vst [vmem:[#allocation3] sm:$0xf] %v622
        %631 = vst [vmem:[#allocation3 + $0x24] sm:$0xf] %v623
        %632 = vst [vmem:[#allocation3 + $0x48] sm:$0xf] %v624
        %633 = vst [vmem:[#allocation3 + $0x6c] sm:$0xf] %v625
        %634 = vst [vmem:[#allocation3 + $0x90] sm:$0xf] %v626
        %635 = vst [vmem:[#allocation3 + $0xb4] sm:$0xf] %v627
        %636 = vst [vmem:[#allocation3 + $0xd8] sm:$0xf] %v628
        %637 = vst [vmem:[#allocation3 + $0xfc] sm:$0xf] %v629
        %v638 = vpack.c.bf16 %v620, %v620
        %639 = vst [vmem:[#allocation3 + $0xc] sm:$0xf] %v623
        %640 = vst [vmem:[#allocation3 + $0x30] sm:$0xf] %v624
        %641 = vst [vmem:[#allocation3 + $0x54] sm:$0xf] %v625
        %642 = vst [vmem:[#allocation3 + $0x78] sm:$0xf] %v626
        %643 = vst [vmem:[#allocation3 + $0x9c] sm:$0xf] %v627
        %644 = vst [vmem:[#allocation3 + $0xc0] sm:$0xf] %v628
        %645 = vst [vmem:[#allocation3 + $0xe4] sm:$0xf] %v629
        %646 = vst [vmem:[#allocation3 + $0x108] sm:$0xf] %v638
        %v647 = vpack.c.bf16 %v621, %v621
        %648 = vst [vmem:[#allocation3 + $0x18] sm:$0xf] %v624
        %649 = vst [vmem:[#allocation3 + $0x3c] sm:$0xf] %v625
        %650 = vst [vmem:[#allocation3 + $0x60] sm:$0xf] %v626
        %651 = vst [vmem:[#allocation3 + $0x84] sm:$0xf] %v627
        %652 = vst [vmem:[#allocation3 + $0xa8] sm:$0xf] %v628
        %653 = vst [vmem:[#allocation3 + $0xcc] sm:$0xf] %v629
        %654 = vst [vmem:[#allocation3 + $0xf0] sm:$0xf] %v638
        %655 = vst [vmem:[#allocation3 + $0x114] sm:$0xf] %v647
        %v656 = vld [vmem:[#allocation2 + $0x8] sm:$0xff]
        %v657 = vld [vmem:[#allocation2 + $0x20] sm:$0xff]
        %v658 = vld [vmem:[#allocation2 + $0x38] sm:$0xff]
        %v659 = vld [vmem:[#allocation2 + $0x50] sm:$0xff]
        %v660 = vld [vmem:[#allocation2 + $0x68] sm:$0xff]
        %v661 = vld [vmem:[#allocation2 + $0x80] sm:$0xff]
        %v662 = vld [vmem:[#allocation2 + $0x98] sm:$0xff]
        %v663 = vld [vmem:[#allocation2 + $0xb0] sm:$0xff]
        %v664 = vld [vmem:[#allocation2 + $0xc8] sm:$0xff]
        %v665 = vld [vmem:[#allocation2 + $0xe0] sm:$0xff]
        %v666 = vpack.c.bf16 %v656, %v656
        %v667 = vpack.c.bf16 %v657, %v657
        %v668 = vpack.c.bf16 %v658, %v658
        %v669 = vpack.c.bf16 %v659, %v659
        %v670 = vpack.c.bf16 %v660, %v660
        %v671 = vpack.c.bf16 %v661, %v661
        %v672 = vpack.c.bf16 %v662, %v662
        %v673 = vpack.c.bf16 %v663, %v663
        %674 = vst [vmem:[#allocation3 + $0x4] sm:$0xf] %v666
        %675 = vst [vmem:[#allocation3 + $0x28] sm:$0xf] %v667
        %676 = vst [vmem:[#allocation3 + $0x4c] sm:$0xf] %v668
        %677 = vst [vmem:[#allocation3 + $0x70] sm:$0xf] %v669
        %678 = vst [vmem:[#allocation3 + $0x94] sm:$0xf] %v670
        %679 = vst [vmem:[#allocation3 + $0xb8] sm:$0xf] %v671
        %680 = vst [vmem:[#allocation3 + $0xdc] sm:$0xf] %v672
        %681 = vst [vmem:[#allocation3 + $0x100] sm:$0xf] %v673
        %v682 = vpack.c.bf16 %v664, %v664
        %683 = vst [vmem:[#allocation3 + $0x10] sm:$0xf] %v667
        %684 = vst [vmem:[#allocation3 + $0x34] sm:$0xf] %v668
        %685 = vst [vmem:[#allocation3 + $0x58] sm:$0xf] %v669
        %686 = vst [vmem:[#allocation3 + $0x7c] sm:$0xf] %v670
        %687 = vst [vmem:[#allocation3 + $0xa0] sm:$0xf] %v671
        %688 = vst [vmem:[#allocation3 + $0xc4] sm:$0xf] %v672
        %689 = vst [vmem:[#allocation3 + $0xe8] sm:$0xf] %v673
        %690 = vst [vmem:[#allocation3 + $0x10c] sm:$0xf] %v682
        %v691 = vpack.c.bf16 %v665, %v665
        %692 = vst [vmem:[#allocation3 + $0x1c] sm:$0xf] %v668
        %693 = vst [vmem:[#allocation3 + $0x40] sm:$0xf] %v669
        %694 = vst [vmem:[#allocation3 + $0x64] sm:$0xf] %v670
        %695 = vst [vmem:[#allocation3 + $0x88] sm:$0xf] %v671
        %696 = vst [vmem:[#allocation3 + $0xac] sm:$0xf] %v672
        %697 = vst [vmem:[#allocation3 + $0xd0] sm:$0xf] %v673
        %698 = vst [vmem:[#allocation3 + $0xf4] sm:$0xf] %v682
        %699 = vst [vmem:[#allocation3 + $0x118] sm:$0xf] %v691
        %v700 = vld [vmem:[#allocation2 + $0x9] sm:$0xff]
        %v701 = vld [vmem:[#allocation2 + $0x21] sm:$0xff]
        %v702 = vld [vmem:[#allocation2 + $0x39] sm:$0xff]
        %v703 = vld [vmem:[#allocation2 + $0x51] sm:$0xff]
        %v704 = vld [vmem:[#allocation2 + $0x69] sm:$0xff]
        %v705 = vld [vmem:[#allocation2 + $0x81] sm:$0xff]
        %v706 = vld [vmem:[#allocation2 + $0x99] sm:$0xff]
        %v707 = vld [vmem:[#allocation2 + $0xb1] sm:$0xff]
        %v708 = vld [vmem:[#allocation2 + $0xc9] sm:$0xff]
        %v709 = vld [vmem:[#allocation2 + $0xe1] sm:$0xff]
        %v710 = vpack.c.bf16 %v700, %v700
        %v711 = vpack.c.bf16 %v701, %v701
        %v712 = vpack.c.bf16 %v702, %v702
        %v713 = vpack.c.bf16 %v703, %v703
        %v714 = vpack.c.bf16 %v704, %v704
        %v715 = vpack.c.bf16 %v705, %v705
        %v716 = vpack.c.bf16 %v706, %v706
        %v717 = vpack.c.bf16 %v707, %v707
        %718 = vst [vmem:[#allocation3 + $0x8] sm:$0xf] %v710
        %719 = vst [vmem:[#allocation3 + $0x2c] sm:$0xf] %v711
        %720 = vst [vmem:[#allocation3 + $0x50] sm:$0xf] %v712
        %721 = vst [vmem:[#allocation3 + $0x74] sm:$0xf] %v713
        %722 = vst [vmem:[#allocation3 + $0x98] sm:$0xf] %v714
        %723 = vst [vmem:[#allocation3 + $0xbc] sm:$0xf] %v715
        %724 = vst [vmem:[#allocation3 + $0xe0] sm:$0xf] %v716
        %725 = vst [vmem:[#allocation3 + $0x104] sm:$0xf] %v717
        %v726 = vpack.c.bf16 %v708, %v708
        %727 = vst [vmem:[#allocation3 + $0x14] sm:$0xf] %v711
        %728 = vst [vmem:[#allocation3 + $0x38] sm:$0xf] %v712
        %729 = vst [vmem:[#allocation3 + $0x5c] sm:$0xf] %v713
        %730 = vst [vmem:[#allocation3 + $0x80] sm:$0xf] %v714
        %731 = vst [vmem:[#allocation3 + $0xa4] sm:$0xf] %v715
        %732 = vst [vmem:[#allocation3 + $0xc8] sm:$0xf] %v716
        %733 = vst [vmem:[#allocation3 + $0xec] sm:$0xf] %v717
        %734 = vst [vmem:[#allocation3 + $0x110] sm:$0xf] %v726
        %v735 = vpack.c.bf16 %v709, %v709
        %736 = vst [vmem:[#allocation3 + $0x20] sm:$0xf] %v712
        %737 = vst [vmem:[#allocation3 + $0x44] sm:$0xf] %v713
        %738 = vst [vmem:[#allocation3 + $0x68] sm:$0xf] %v714
        %739 = vst [vmem:[#allocation3 + $0x8c] sm:$0xf] %v715
        %740 = vst [vmem:[#allocation3 + $0xb0] sm:$0xf] %v716
        %741 = vst [vmem:[#allocation3 + $0xd4] sm:$0xf] %v717
        %742 = vst [vmem:[#allocation3 + $0xf8] sm:$0xf] %v726
        %743 = vst [vmem:[#allocation3 + $0x11c] sm:$0xf] %v735
        %v744 = vld [vmem:[#allocation3] sm:$0xff]
        %v745 = vld [vmem:[#allocation3 + $0x8] sm:$0xff]
        %v746 = vld [vmem:[#allocation3 + $0x10] sm:$0xff]
        %v747 = vld [vmem:[#allocation3 + $0x18] sm:$0xff]
        %v748 = vld [vmem:[#allocation3 + $0x20] sm:$0xf]
        %v749 = vld [vmem:[#allocation3 + $0x24] sm:$0xff]
        %v750 = vld [vmem:[#allocation3 + $0x2c] sm:$0xff]
        %v751 = vld [vmem:[#allocation3 + $0x34] sm:$0xff]
        %v752 = vld [vmem:[#allocation3 + $0x3c] sm:$0xff]
        %v753 = vld [vmem:[#allocation3 + $0x44] sm:$0xf]
        %v754 = vld [vmem:[#allocation3 + $0x48] sm:$0xff]
        %v755 = vld [vmem:[#allocation3 + $0x50] sm:$0xff]
        %v756 = vld [vmem:[#allocation3 + $0x58] sm:$0xff]
        %v757 = vld [vmem:[#allocation3 + $0x60] sm:$0xff]
        %v758 = vld [vmem:[#allocation3 + $0x68] sm:$0xf]
        %v759 = vld [vmem:[#allocation3 + $0x6c] sm:$0xff]
        %v760 = vld [vmem:[#allocation3 + $0x74] sm:$0xff]
        %v761 = vld [vmem:[#allocation3 + $0x7c] sm:$0xff]
        %v762 = vld [vmem:[#allocation3 + $0x84] sm:$0xff]
        %v763 = vld [vmem:[#allocation3 + $0x8c] sm:$0xf]
        %v764 = vld [vmem:[#allocation3 + $0x90] sm:$0xff]
        %v765 = vld [vmem:[#allocation3 + $0x98] sm:$0xff]
        %v766 = vld [vmem:[#allocation3 + $0xa0] sm:$0xff]
        %v767 = vld [vmem:[#allocation3 + $0xa8] sm:$0xff]
        %v768 = vld [vmem:[#allocation3 + $0xb0] sm:$0xf]
        %v769 = vld [vmem:[#allocation3 + $0xb4] sm:$0xff]
        %v770 = vld [vmem:[#allocation3 + $0xbc] sm:$0xff]
        %v771 = vld [vmem:[#allocation3 + $0xc4] sm:$0xff]
        %v772 = vld [vmem:[#allocation3 + $0xcc] sm:$0xff]
        %v773 = vld [vmem:[#allocation3 + $0xd4] sm:$0xf]
        %v774 = vld [vmem:[#allocation3 + $0xd8] sm:$0xff]
        %v775 = vld [vmem:[#allocation3 + $0xe0] sm:$0xff]
        %v776 = vld [vmem:[#allocation3 + $0xe8] sm:$0xff]
        %v777 = vld [vmem:[#allocation3 + $0xf0] sm:$0xff]
        %v778 = vld [vmem:[#allocation3 + $0xf8] sm:$0xf]
        %v779 = vld [vmem:[#allocation3 + $0xfc] sm:$0xff]
        %v780 = vld [vmem:[#allocation3 + $0x104] sm:$0xff]
        %v781 = vld [vmem:[#allocation3 + $0x10c] sm:$0xff]
        %v782 = vld [vmem:[#allocation3 + $0x114] sm:$0xff]
        %v783 = vld [vmem:[#allocation3 + $0x11c] sm:$0xf]
        %v784 = vld [vmem:[%s2] sm:$0xf]
        %v785 = vld [vmem:[%s2 + $0x4] sm:$0xf]
        %v786 = vld [vmem:[%s2 + $0x8] sm:$0xf]
        %v787 = vld [vmem:[%s2 + $0xc] sm:$0xf]
        %v788 = vld [vmem:[%s2 + $0x10] sm:$0xf]
        %v789 = vld [vmem:[%s2 + $0x14] sm:$0xf]
        %v790 = vld [vmem:[%s2 + $0x18] sm:$0xf]
        %v791 = vld [vmem:[%s2 + $0x1c] sm:$0xf]
        %v792 = vld [vmem:[%s2 + $0x20] sm:$0xf]
        %v793 = vld [vmem:[%s2 + $0x24] sm:$0xf]
        %v794 = vld [vmem:[%s2 + $0x28] sm:$0xf]
        %v795 = vld [vmem:[%s2 + $0x2c] sm:$0xf]
        %v796 = vld [vmem:[%s2 + $0x30] sm:$0xf]
        %v797 = vld [vmem:[%s2 + $0x34] sm:$0xf]
        %v798 = vld [vmem:[%s2 + $0x38] sm:$0xf]
        %v799 = vld [vmem:[%s2 + $0x3c] sm:$0xf]
        %v800 = vld [vmem:[%s2 + $0x40] sm:$0xf]
        %v801 = vld [vmem:[%s2 + $0x44] sm:$0xf]
        %v802 = vld [vmem:[%s2 + $0x48] sm:$0xf]
        %v803 = vld [vmem:[%s2 + $0x4c] sm:$0xf]
        %v804 = vld [vmem:[%s2 + $0x50] sm:$0xf]
        %v805 = vld [vmem:[%s2 + $0x54] sm:$0xf]
        %v806 = vld [vmem:[%s2 + $0x58] sm:$0xf]
        %v807 = vld [vmem:[%s2 + $0x5c] sm:$0xf]
        %v808 = vld [vmem:[%s2 + $0x60] sm:$0xf]
        %v809 = vld [vmem:[%s2 + $0x64] sm:$0xf]
        %v810 = vld [vmem:[%s2 + $0x68] sm:$0xf]
        %v811 = vld [vmem:[%s2 + $0x6c] sm:$0xf]
        %v812 = vld [vmem:[%s2 + $0x70] sm:$0xf]
        %v813 = vld [vmem:[%s2 + $0x74] sm:$0xf]
        %v814 = vld [vmem:[%s2 + $0x78] sm:$0xf]
        %v815 = vld [vmem:[%s2 + $0x7c] sm:$0xf]
        %v816 = vld [vmem:[%s2 + $0x80] sm:$0xf]
        %v817 = vld [vmem:[%s2 + $0x84] sm:$0xf]
        %v818 = vld [vmem:[%s2 + $0x88] sm:$0xf]
        %v819 = vld [vmem:[%s2 + $0x8c] sm:$0xf]
        %v820 = vld [vmem:[%s2 + $0x90] sm:$0xf]
        %v821 = vld [vmem:[%s2 + $0x94] sm:$0xf]
        %v822 = vld [vmem:[%s2 + $0x98] sm:$0xf]
        %v823 = vld [vmem:[%s2 + $0x9c] sm:$0xf]
        %v824 = vld [vmem:[%s2 + $0xa0] sm:$0xf]
        %v825 = vld [vmem:[%s2 + $0xa4] sm:$0xf]
        %v826 = vld [vmem:[%s2 + $0xa8] sm:$0xf]
        %v827 = vld [vmem:[%s2 + $0xac] sm:$0xf]
        %v828 = vld [vmem:[%s2 + $0xb0] sm:$0xf]
        %v829 = vld [vmem:[%s2 + $0xb4] sm:$0xf]
        %v830 = vld [vmem:[%s2 + $0xb8] sm:$0xf]
        %v831 = vld [vmem:[%s2 + $0xbc] sm:$0xf]
        %v832 = vld [vmem:[%s2 + $0xc0] sm:$0xf]
        %v833 = vld [vmem:[%s2 + $0xc4] sm:$0xf]
        %v834 = vld [vmem:[%s2 + $0xc8] sm:$0xf]
        %v835 = vld [vmem:[%s2 + $0xcc] sm:$0xf]
        %v836 = vld [vmem:[%s2 + $0xd0] sm:$0xf]
        %v837 = vld [vmem:[%s2 + $0xd4] sm:$0xf]
        %v838 = vld [vmem:[%s2 + $0xd8] sm:$0xf]
        %v839 = vld [vmem:[%s2 + $0xdc] sm:$0xf]
        %v840 = vld [vmem:[%s2 + $0xe0] sm:$0xf]
        %v841 = vld [vmem:[%s2 + $0xe4] sm:$0xf]
        %v842 = vld [vmem:[%s2 + $0xe8] sm:$0xf]
        %v843 = vld [vmem:[%s2 + $0xec] sm:$0xf]
        %v844 = vld [vmem:[%s2 + $0xf0] sm:$0xf]
        %v845 = vld [vmem:[%s2 + $0xf4] sm:$0xf]
        %v846 = vld [vmem:[%s2 + $0xf8] sm:$0xf]
        %v847 = vld [vmem:[%s2 + $0xfc] sm:$0xf]
        %v848 = vld [vmem:[%s2 + $0x100] sm:$0xf]
        %v849 = vld [vmem:[%s2 + $0x104] sm:$0xf]
        %v850 = vld [vmem:[%s2 + $0x108] sm:$0xf]
        %v851 = vld [vmem:[%s2 + $0x10c] sm:$0xf]
        %v852 = vld [vmem:[%s2 + $0x110] sm:$0xf]
        %v853 = vld [vmem:[%s2 + $0x114] sm:$0xf]
        %v854 = vld [vmem:[%s2 + $0x118] sm:$0xf]
        %v855 = vld [vmem:[%s2 + $0x11c] sm:$0xf]
        %v856 = vld [vmem:[%s2 + $0x120] sm:$0xf]
        %v857 = vld [vmem:[%s2 + $0x124] sm:$0xf]
        %v858 = vld [vmem:[%s2 + $0x128] sm:$0xf]
        %v859 = vld [vmem:[%s2 + $0x12c] sm:$0xf]
        %v860 = vld [vmem:[%s2 + $0x130] sm:$0xf]
        %v861 = vld [vmem:[%s2 + $0x134] sm:$0xf]
        %v862 = vld [vmem:[%s2 + $0x138] sm:$0xf]
        %v863 = vld [vmem:[%s2 + $0x13c] sm:$0xf]
        %v864 = vld [vmem:[%s2 + $0x140] sm:$0xf]
        %v865 = vld [vmem:[%s2 + $0x144] sm:$0xf]
        %v866 = vld [vmem:[%s2 + $0x148] sm:$0xf]
        %v867 = vld [vmem:[%s2 + $0x14c] sm:$0xf]
        %v868 = vld [vmem:[%s2 + $0x150] sm:$0xf]
        %v869 = vld [vmem:[%s2 + $0x154] sm:$0xf]
        %v870 = vld [vmem:[%s2 + $0x158] sm:$0xf]
        %v871 = vld [vmem:[%s2 + $0x15c] sm:$0xf]
        %v872 = vld [vmem:[%s2 + $0x160] sm:$0xf]
        %v873 = vld [vmem:[%s2 + $0x164] sm:$0xf]
        %v874 = vld [vmem:[%s2 + $0x168] sm:$0xf]
        %v875 = vld [vmem:[%s2 + $0x16c] sm:$0xf]
        %v876 = vld [vmem:[%s2 + $0x170] sm:$0xf]
        %v877 = vld [vmem:[%s2 + $0x174] sm:$0xf]
        %v878 = vld [vmem:[%s2 + $0x178] sm:$0xf]
        %v879 = vld [vmem:[%s2 + $0x17c] sm:$0xf]
        %v880 = vld [vmem:[%s2 + $0x180] sm:$0xf]
        %v881 = vld [vmem:[%s2 + $0x184] sm:$0xf]
        %v882 = vld [vmem:[%s2 + $0x188] sm:$0xf]
        %v883 = vld [vmem:[%s2 + $0x18c] sm:$0xf]
        %v884 = vld [vmem:[%s2 + $0x190] sm:$0xf]
        %v885 = vld [vmem:[%s2 + $0x194] sm:$0xf]
        %v886 = vld [vmem:[%s2 + $0x198] sm:$0xf]
        %v887 = vld [vmem:[%s2 + $0x19c] sm:$0xf]
        %v888 = vld [vmem:[%s2 + $0x1a0] sm:$0xf]
        %v889 = vld [vmem:[%s2 + $0x1a4] sm:$0xf]
        %v890 = vld [vmem:[%s2 + $0x1a8] sm:$0xf]
        %v891 = vld [vmem:[%s2 + $0x1ac] sm:$0xf]
        %v892 = vld [vmem:[%s2 + $0x1b0] sm:$0xf]
        %v893 = vld [vmem:[%s2 + $0x1b4] sm:$0xf]
        %v894 = vld [vmem:[%s2 + $0x1b8] sm:$0xf]
        %v895 = vld [vmem:[%s2 + $0x1bc] sm:$0xf]
        %v896 = vld [vmem:[%s2 + $0x1c0] sm:$0xf]
        %v897 = vld [vmem:[%s2 + $0x1c4] sm:$0xf]
        %v898 = vld [vmem:[%s2 + $0x1c8] sm:$0xf]
        %v899 = vld [vmem:[%s2 + $0x1cc] sm:$0xf]
        %v900 = vld [vmem:[%s2 + $0x1d0] sm:$0xf]
        %v901 = vld [vmem:[%s2 + $0x1d4] sm:$0xf]
        %v902 = vld [vmem:[%s2 + $0x1d8] sm:$0xf]
        %v903 = vld [vmem:[%s2 + $0x1dc] sm:$0xf]
        %v904 = vld [vmem:[%s2 + $0x1e0] sm:$0xf]
        %v905 = vld [vmem:[%s2 + $0x1e4] sm:$0xf]
        %v906 = vld [vmem:[%s2 + $0x1e8] sm:$0xf]
        %v907 = vld [vmem:[%s2 + $0x1ec] sm:$0xf]
        %v908 = vld [vmem:[%s2 + $0x1f0] sm:$0xf]
        %v909 = vld [vmem:[%s2 + $0x1f4] sm:$0xf]
        %v910 = vld [vmem:[%s2 + $0x1f8] sm:$0xf]
        %v911 = vld [vmem:[%s2 + $0x1fc] sm:$0xf]
        %v912 = vld [vmem:[%s2 + $0x200] sm:$0xf]
        %v913 = vld [vmem:[%s2 + $0x204] sm:$0xf]
        %v914 = vld [vmem:[%s2 + $0x208] sm:$0xf]
        %v915 = vld [vmem:[%s2 + $0x20c] sm:$0xf]
        %v916 = vld [vmem:[%s2 + $0x210] sm:$0xf]
        %v917 = vld [vmem:[%s2 + $0x214] sm:$0xf]
        %v918 = vld [vmem:[%s2 + $0x218] sm:$0xf]
        %v919 = vld [vmem:[%s2 + $0x21c] sm:$0xf]
        %v920 = vld [vmem:[%s2 + $0x220] sm:$0xf]
        %v921 = vld [vmem:[%s2 + $0x224] sm:$0xf]
        %v922 = vld [vmem:[%s2 + $0x228] sm:$0xf]
        %v923 = vld [vmem:[%s2 + $0x22c] sm:$0xf]
        %v924 = vld [vmem:[%s2 + $0x230] sm:$0xf]
        %v925 = vld [vmem:[%s2 + $0x234] sm:$0xf]
        %v926 = vld [vmem:[%s2 + $0x238] sm:$0xf]
        %v927 = vld [vmem:[%s2 + $0x23c] sm:$0xf]
        %v928 = vperm.slane %v278, 1
        %v969 = vunpack.c.l.b16 %v744
        %v970 = vunpack.c.h.b16 %v744
        %v971 = vunpack.c.l.b16 %v745
        %v972 = vunpack.c.h.b16 %v745
        %v973 = vunpack.c.l.b16 %v746
        %v974 = vunpack.c.h.b16 %v746
        %v975 = vunpack.c.l.b16 %v747
        %v976 = vunpack.c.h.b16 %v747
        %v977 = vunpack.c.l.b16 %v748
        %v978 = vunpack.c.l.b16 %v749
        %v979 = vunpack.c.h.b16 %v749
        %v980 = vunpack.c.l.b16 %v750
        %v981 = vunpack.c.h.b16 %v750
        %v982 = vunpack.c.l.b16 %v751
        %v983 = vunpack.c.h.b16 %v751
        %v984 = vunpack.c.l.b16 %v752
        %v985 = vunpack.c.h.b16 %v752
        %v986 = vunpack.c.l.b16 %v753
        %v987 = vunpack.c.l.b16 %v754
        %v988 = vunpack.c.h.b16 %v754
        %v989 = vunpack.c.l.b16 %v755
        %v990 = vunpack.c.h.b16 %v755
        %v991 = vunpack.c.l.b16 %v756
        %v992 = vunpack.c.h.b16 %v756
        %v993 = vunpack.c.l.b16 %v757
        %v994 = vunpack.c.h.b16 %v757
        %v995 = vunpack.c.l.b16 %v758
        %v996 = vunpack.c.l.b16 %v759
        %v997 = vunpack.c.h.b16 %v759
        %v998 = vunpack.c.l.b16 %v760
        %v999 = vunpack.c.h.b16 %v760
        %v1000 = vunpack.c.l.b16 %v761
        %v1001 = vunpack.c.h.b16 %v761
        %v1002 = vunpack.c.l.b16 %v762
        %v1003 = vunpack.c.h.b16 %v762
        %v1004 = vunpack.c.l.b16 %v763
        %v1005 = vunpack.c.l.b16 %v764
        %v1006 = vunpack.c.h.b16 %v764
        %v1007 = vunpack.c.l.b16 %v765
        %v1008 = vunpack.c.h.b16 %v765
        %v1009 = vunpack.c.l.b16 %v766
        %v1010 = vunpack.c.h.b16 %v766
        %v1011 = vunpack.c.l.b16 %v767
        %v1012 = vunpack.c.h.b16 %v767
        %v1013 = vunpack.c.l.b16 %v768
        %v1014 = vunpack.c.l.b16 %v769
        %v1015 = vunpack.c.h.b16 %v769
        %v1016 = vunpack.c.l.b16 %v770
        %v1017 = vunpack.c.h.b16 %v770
        %v1018 = vunpack.c.l.b16 %v771
        %v1019 = vunpack.c.h.b16 %v771
        %v1020 = vunpack.c.l.b16 %v772
        %v1021 = vunpack.c.h.b16 %v772
        %v1022 = vunpack.c.l.b16 %v773
        %v1023 = vunpack.c.l.b16 %v774
        %v1024 = vunpack.c.h.b16 %v774
        %v1025 = vunpack.c.l.b16 %v775
        %v1026 = vunpack.c.h.b16 %v775
        %v1027 = vunpack.c.l.b16 %v776
        %v1028 = vunpack.c.h.b16 %v776
        %v1029 = vunpack.c.l.b16 %v777
        %v1030 = vunpack.c.h.b16 %v777
        %v1031 = vunpack.c.l.b16 %v778
        %v1032 = vunpack.c.l.b16 %v779
        %v1033 = vunpack.c.h.b16 %v779
        %v1034 = vunpack.c.l.b16 %v780
        %v1035 = vunpack.c.h.b16 %v780
        %v1036 = vunpack.c.l.b16 %v781
        %v1037 = vunpack.c.h.b16 %v781
        %v1038 = vunpack.c.l.b16 %v782
        %v1039 = vunpack.c.h.b16 %v782
        %v1040 = vunpack.c.l.b16 %v783
        %v1041 = vpack.c.b16 %v978, %v969
        %v1042 = vpack.c.b16 %v979, %v970
        %v1043 = vpack.c.b16 %v980, %v971
        %v1044 = vpack.c.b16 %v981, %v972
        %v1045 = vpack.c.b16 %v982, %v973
        %v1046 = vpack.c.b16 %v983, %v974
        %v1047 = vpack.c.b16 %v984, %v975
        %v1048 = vpack.c.b16 %v985, %v976
        %v1049 = vpack.c.b16 %v986, %v977
        %v1050 = vpack.c.b16 %v996, %v987
        %v1051 = vpack.c.b16 %v997, %v988
        %v1052 = vpack.c.b16 %v998, %v989
        %v1053 = vpack.c.b16 %v999, %v990
        %v1054 = vpack.c.b16 %v1000, %v991
        %v1055 = vpack.c.b16 %v1001, %v992
        %v1056 = vpack.c.b16 %v1002, %v993
        %v1057 = vpack.c.b16 %v1003, %v994
        %v1058 = vpack.c.b16 %v1004, %v995
        %v1059 = vpack.c.b16 %v1014, %v1005
        %v1060 = vpack.c.b16 %v1015, %v1006
        %v1061 = vpack.c.b16 %v1016, %v1007
        %v1062 = vpack.c.b16 %v1017, %v1008
        %v1063 = vpack.c.b16 %v1018, %v1009
        %v1064 = vpack.c.b16 %v1019, %v1010
        %v1065 = vpack.c.b16 %v1020, %v1011
        %v1066 = vpack.c.b16 %v1021, %v1012
        %v1067 = vpack.c.b16 %v1022, %v1013
        %v1068 = vpack.c.b16 %v1032, %v1023
        %v1069 = vpack.c.b16 %v1033, %v1024
        %v1070 = vpack.c.b16 %v1034, %v1025
        %v1071 = vpack.c.b16 %v1035, %v1026
        %v1072 = vpack.c.b16 %v1036, %v1027
        %v1073 = vpack.c.b16 %v1037, %v1028
        %v1074 = vpack.c.b16 %v1038, %v1029
        %v1075 = vpack.c.b16 %v1039, %v1030
        %v1076 = vpack.c.b16 %v1040, %v1031
        %v1257 = vunpack.c.l.b16 %v784
        %v1258 = vunpack.c.l.b16 %v785
        %v1259 = vunpack.c.l.b16 %v786
        %v1260 = vunpack.c.l.b16 %v787
        %v1261 = vunpack.c.l.b16 %v788
        %v1262 = vunpack.c.l.b16 %v789
        %v1263 = vunpack.c.l.b16 %v790
        %v1264 = vunpack.c.l.b16 %v791
        %v1265 = vunpack.c.l.b16 %v792
        %v1266 = vunpack.c.l.b16 %v793
        %v1267 = vunpack.c.l.b16 %v794
        %v1268 = vunpack.c.l.b16 %v795
        %v1269 = vunpack.c.l.b16 %v796
        %v1270 = vunpack.c.l.b16 %v797
        %v1271 = vunpack.c.l.b16 %v798
        %v1272 = vunpack.c.l.b16 %v799
        %v1273 = vunpack.c.l.b16 %v800
        %v1274 = vunpack.c.l.b16 %v801
        %v1275 = vunpack.c.l.b16 %v802
        %v1276 = vunpack.c.l.b16 %v803
        %v1277 = vunpack.c.l.b16 %v804
        %v1278 = vunpack.c.l.b16 %v805
        %v1279 = vunpack.c.l.b16 %v806
        %v1280 = vunpack.c.l.b16 %v807
        %v1281 = vunpack.c.l.b16 %v808
        %v1282 = vunpack.c.l.b16 %v809
        %v1283 = vunpack.c.l.b16 %v810
        %v1284 = vunpack.c.l.b16 %v811
        %v1285 = vunpack.c.l.b16 %v812
        %v1286 = vunpack.c.l.b16 %v813
        %v1287 = vunpack.c.l.b16 %v814
        %v1288 = vunpack.c.l.b16 %v815
        %v1289 = vunpack.c.l.b16 %v816
        %v1290 = vunpack.c.l.b16 %v817
        %v1291 = vunpack.c.l.b16 %v818
        %v1292 = vunpack.c.l.b16 %v819
        %v1293 = vunpack.c.l.b16 %v820
        %v1294 = vunpack.c.l.b16 %v821
        %v1295 = vunpack.c.l.b16 %v822
        %v1296 = vunpack.c.l.b16 %v823
        %v1297 = vunpack.c.l.b16 %v824
        %v1298 = vunpack.c.l.b16 %v825
        %v1299 = vunpack.c.l.b16 %v826
        %v1300 = vunpack.c.l.b16 %v827
        %v1301 = vunpack.c.l.b16 %v828
        %v1302 = vunpack.c.l.b16 %v829
        %v1303 = vunpack.c.l.b16 %v830
        %v1304 = vunpack.c.l.b16 %v831
        %v1305 = vunpack.c.l.b16 %v832
        %v1306 = vunpack.c.l.b16 %v833
        %v1307 = vunpack.c.l.b16 %v834
        %v1308 = vunpack.c.l.b16 %v835
        %v1309 = vunpack.c.l.b16 %v836
        %v1310 = vunpack.c.l.b16 %v837
        %v1311 = vunpack.c.l.b16 %v838
        %v1312 = vunpack.c.l.b16 %v839
        %v1313 = vunpack.c.l.b16 %v840
        %v1314 = vunpack.c.l.b16 %v841
        %v1315 = vunpack.c.l.b16 %v842
        %v1316 = vunpack.c.l.b16 %v843
        %v1317 = vunpack.c.l.b16 %v844
        %v1318 = vunpack.c.l.b16 %v845
        %v1319 = vunpack.c.l.b16 %v846
        %v1320 = vunpack.c.l.b16 %v847
        %v1321 = vunpack.c.l.b16 %v848
        %v1322 = vunpack.c.l.b16 %v849
        %v1323 = vunpack.c.l.b16 %v850
        %v1324 = vunpack.c.l.b16 %v851
        %v1325 = vunpack.c.l.b16 %v852
        %v1326 = vunpack.c.l.b16 %v853
        %v1327 = vunpack.c.l.b16 %v854
        %v1328 = vunpack.c.l.b16 %v855
        %v1329 = vunpack.c.l.b16 %v856
        %v1330 = vunpack.c.l.b16 %v857
        %v1331 = vunpack.c.l.b16 %v858
        %v1332 = vunpack.c.l.b16 %v859
        %v1333 = vunpack.c.l.b16 %v860
        %v1334 = vunpack.c.l.b16 %v861
        %v1335 = vunpack.c.l.b16 %v862
        %v1336 = vunpack.c.l.b16 %v863
        %v1337 = vunpack.c.l.b16 %v864
        %v1338 = vunpack.c.l.b16 %v865
        %v1339 = vunpack.c.l.b16 %v866
        %v1340 = vunpack.c.l.b16 %v867
        %v1341 = vunpack.c.l.b16 %v868
        %v1342 = vunpack.c.l.b16 %v869
        %v1343 = vunpack.c.l.b16 %v870
        %v1344 = vunpack.c.l.b16 %v871
        %v1345 = vunpack.c.l.b16 %v872
        %v1346 = vunpack.c.l.b16 %v873
        %v1347 = vunpack.c.l.b16 %v874
        %v1348 = vunpack.c.l.b16 %v875
        %v1349 = vunpack.c.l.b16 %v876
        %v1350 = vunpack.c.l.b16 %v877
        %v1351 = vunpack.c.l.b16 %v878
        %v1352 = vunpack.c.l.b16 %v879
        %v1353 = vunpack.c.l.b16 %v880
        %v1354 = vunpack.c.l.b16 %v881
        %v1355 = vunpack.c.l.b16 %v882
        %v1356 = vunpack.c.l.b16 %v883
        %v1357 = vunpack.c.l.b16 %v884
        %v1358 = vunpack.c.l.b16 %v885
        %v1359 = vunpack.c.l.b16 %v886
        %v1360 = vunpack.c.l.b16 %v887
        %v1361 = vunpack.c.l.b16 %v888
        %v1362 = vunpack.c.l.b16 %v889
        %v1363 = vunpack.c.l.b16 %v890
        %v1364 = vunpack.c.l.b16 %v891
        %v1365 = vunpack.c.l.b16 %v892
        %v1366 = vunpack.c.l.b16 %v893
        %v1367 = vunpack.c.l.b16 %v894
        %v1368 = vunpack.c.l.b16 %v895
        %v1369 = vunpack.c.l.b16 %v896
        %v1370 = vunpack.c.l.b16 %v897
        %v1371 = vunpack.c.l.b16 %v898
        %v1372 = vunpack.c.l.b16 %v899
        %v1373 = vunpack.c.l.b16 %v900
        %v1374 = vunpack.c.l.b16 %v901
        %v1375 = vunpack.c.l.b16 %v902
        %v1376 = vunpack.c.l.b16 %v903
        %v1377 = vunpack.c.l.b16 %v904
        %v1378 = vunpack.c.l.b16 %v905
        %v1379 = vunpack.c.l.b16 %v906
        %v1380 = vunpack.c.l.b16 %v907
        %v1381 = vunpack.c.l.b16 %v908
        %v1382 = vunpack.c.l.b16 %v909
        %v1383 = vunpack.c.l.b16 %v910
        %v1384 = vunpack.c.l.b16 %v911
        %v1385 = vunpack.c.l.b16 %v912
        %v1386 = vunpack.c.l.b16 %v913
        %v1387 = vunpack.c.l.b16 %v914
        %v1388 = vunpack.c.l.b16 %v915
        %v1389 = vunpack.c.l.b16 %v916
        %v1390 = vunpack.c.l.b16 %v917
        %v1391 = vunpack.c.l.b16 %v918
        %v1392 = vunpack.c.l.b16 %v919
        %v1393 = vunpack.c.l.b16 %v920
        %v1394 = vunpack.c.l.b16 %v921
        %v1395 = vunpack.c.l.b16 %v922
        %v1396 = vunpack.c.l.b16 %v923
        %v1397 = vunpack.c.l.b16 %v924
        %v1398 = vunpack.c.l.b16 %v925
        %v1399 = vunpack.c.l.b16 %v926
        %v1400 = vunpack.c.l.b16 %v927
        %v1401 = vpack.c.b16 %v1258, %v1257
        %v1402 = vpack.c.b16 %v1260, %v1259
        %v1403 = vpack.c.b16 %v1262, %v1261
        %v1404 = vpack.c.b16 %v1264, %v1263
        %v1405 = vpack.c.b16 %v1266, %v1265
        %v1406 = vpack.c.b16 %v1268, %v1267
        %v1407 = vpack.c.b16 %v1270, %v1269
        %v1408 = vpack.c.b16 %v1272, %v1271
        %v1409 = vpack.c.b16 %v1274, %v1273
        %v1410 = vpack.c.b16 %v1276, %v1275
        %v1411 = vpack.c.b16 %v1278, %v1277
        %v1412 = vpack.c.b16 %v1280, %v1279
        %v1413 = vpack.c.b16 %v1282, %v1281
        %v1414 = vpack.c.b16 %v1284, %v1283
        %v1415 = vpack.c.b16 %v1286, %v1285
        %v1416 = vpack.c.b16 %v1288, %v1287
        %v1417 = vpack.c.b16 %v1290, %v1289
        %v1418 = vpack.c.b16 %v1292, %v1291
        %v1419 = vpack.c.b16 %v1294, %v1293
        %v1420 = vpack.c.b16 %v1296, %v1295
        %v1421 = vpack.c.b16 %v1298, %v1297
        %v1422 = vpack.c.b16 %v1300, %v1299
        %v1423 = vpack.c.b16 %v1302, %v1301
        %v1424 = vpack.c.b16 %v1304, %v1303
        %v1425 = vpack.c.b16 %v1306, %v1305
        %v1426 = vpack.c.b16 %v1308, %v1307
        %v1427 = vpack.c.b16 %v1310, %v1309
        %v1428 = vpack.c.b16 %v1312, %v1311
        %v1429 = vpack.c.b16 %v1314, %v1313
        %v1430 = vpack.c.b16 %v1316, %v1315
        %v1431 = vpack.c.b16 %v1318, %v1317
        %v1432 = vpack.c.b16 %v1320, %v1319
        %v1433 = vpack.c.b16 %v1322, %v1321
        %v1434 = vpack.c.b16 %v1324, %v1323
        %v1435 = vpack.c.b16 %v1326, %v1325
        %v1436 = vpack.c.b16 %v1328, %v1327
        %v1437 = vpack.c.b16 %v1330, %v1329
        %v1438 = vpack.c.b16 %v1332, %v1331
        %v1439 = vpack.c.b16 %v1334, %v1333
        %v1440 = vpack.c.b16 %v1336, %v1335
        %v1441 = vpack.c.b16 %v1338, %v1337
        %v1442 = vpack.c.b16 %v1340, %v1339
        %v1443 = vpack.c.b16 %v1342, %v1341
        %v1444 = vpack.c.b16 %v1344, %v1343
        %v1445 = vpack.c.b16 %v1346, %v1345
        %v1446 = vpack.c.b16 %v1348, %v1347
        %v1447 = vpack.c.b16 %v1350, %v1349
        %v1448 = vpack.c.b16 %v1352, %v1351
        %v1449 = vpack.c.b16 %v1354, %v1353
        %v1450 = vpack.c.b16 %v1356, %v1355
        %v1451 = vpack.c.b16 %v1358, %v1357
        %v1452 = vpack.c.b16 %v1360, %v1359
        %v1453 = vpack.c.b16 %v1362, %v1361
        %v1454 = vpack.c.b16 %v1364, %v1363
        %v1455 = vpack.c.b16 %v1366, %v1365
        %v1456 = vpack.c.b16 %v1368, %v1367
        %v1457 = vpack.c.b16 %v1370, %v1369
        %v1458 = vpack.c.b16 %v1372, %v1371
        %v1459 = vpack.c.b16 %v1374, %v1373
        %v1460 = vpack.c.b16 %v1376, %v1375
        %v1461 = vpack.c.b16 %v1378, %v1377
        %v1462 = vpack.c.b16 %v1380, %v1379
        %v1463 = vpack.c.b16 %v1382, %v1381
        %v1464 = vpack.c.b16 %v1384, %v1383
        %v1465 = vpack.c.b16 %v1386, %v1385
        %v1466 = vpack.c.b16 %v1388, %v1387
        %v1467 = vpack.c.b16 %v1390, %v1389
        %v1468 = vpack.c.b16 %v1392, %v1391
        %v1469 = vpack.c.b16 %v1394, %v1393
        %v1470 = vpack.c.b16 %v1396, %v1395
        %v1471 = vpack.c.b16 %v1398, %v1397
        %v1472 = vpack.c.b16 %v1400, %v1399
        %1545 = vmatpush.bf16.msra.mxu0 %v1408
        %1546 = vmatpush.bf16.msra.mxu0 %v1407
        %1547 = vmatpush.bf16.msra.mxu0 %v1406
        %1548 = vmatpush.bf16.msra.mxu0 %v1405
        %1549 = vmatpush.bf16.msra.mxu0 %v1404
        %1550 = vmatpush.bf16.msra.mxu0 %v1403
        %1551 = vmatpush.bf16.msra.mxu0 %v1402
        %1552 = vmatpush.bf16.msra.mxu0 %v1401
        %1553 = vmatmul.bf16.gmra.mxu0 %v1041
        %v1554 = vpop.f32.mrf.mxu0
        %v1555 = vadd.f32 %v928, %v1554
        %v1556 = vpop.f32.mrf.mxu0
        %v1557 = vadd.f32 %v928, %v1556
        %1558 = vmatmul.bf16.gmra.mxu0 %v1050
        %v1559 = vpop.f32.mrf.mxu0
        %v1560 = vadd.f32 %v928, %v1559
        %v1561 = vpop.f32.mrf.mxu0
        %v1562 = vadd.f32 %v928, %v1561
        %1563 = vmatmul.bf16.gmra.mxu0 %v1059
        %v1564 = vpop.f32.mrf.mxu0
        %v1565 = vadd.f32 %v928, %v1564
        %v1566 = vpop.f32.mrf.mxu0
        %v1567 = vadd.f32 %v928, %v1566
        %1568 = vmatmul.bf16.gmra.mxu0 %v1068
        %v1569 = vpop.f32.mrf.mxu0
        %v1570 = vadd.f32 %v928, %v1569
        %v1571 = vpop.f32.mrf.mxu0
        %v1572 = vadd.f32 %v928, %v1571
        %1573 = vdwg.mxu0
        %1574 = vmatpush.bf16.msra.mxu0 %v1416
        %1575 = vmatpush.bf16.msra.mxu0 %v1415
        %1576 = vmatpush.bf16.msra.mxu0 %v1414
        %1577 = vmatpush.bf16.msra.mxu0 %v1413
        %1578 = vmatpush.bf16.msra.mxu0 %v1412
        %1579 = vmatpush.bf16.msra.mxu0 %v1411
        %1580 = vmatpush.bf16.msra.mxu0 %v1410
        %1581 = vmatpush.bf16.msra.mxu0 %v1409
        %1582 = vmatmul.bf16.gmra.mxu0 %v1042
        %v1583 = vpop.f32.mrf.mxu0
        %v1584 = vadd.f32 %v1555, %v1583
        %v1585 = vpop.f32.mrf.mxu0
        %v1586 = vadd.f32 %v1557, %v1585
        %1587 = vmatmul.bf16.gmra.mxu0 %v1051
        %v1588 = vpop.f32.mrf.mxu0
        %v1589 = vadd.f32 %v1560, %v1588
        %v1590 = vpop.f32.mrf.mxu0
        %v1591 = vadd.f32 %v1562, %v1590
        %1592 = vmatmul.bf16.gmra.mxu0 %v1060
        %v1593 = vpop.f32.mrf.mxu0
        %v1594 = vadd.f32 %v1565, %v1593
        %v1595 = vpop.f32.mrf.mxu0
        %v1596 = vadd.f32 %v1567, %v1595
        %1597 = vmatmul.bf16.gmra.mxu0 %v1069
        %v1598 = vpop.f32.mrf.mxu0
        %v1599 = vadd.f32 %v1570, %v1598
        %v1600 = vpop.f32.mrf.mxu0
        %v1601 = vadd.f32 %v1572, %v1600
        %1602 = vdwg.mxu0
        %1603 = vmatpush.bf16.msra.mxu0 %v1424
        %1604 = vmatpush.bf16.msra.mxu0 %v1423
        %1605 = vmatpush.bf16.msra.mxu0 %v1422
        %1606 = vmatpush.bf16.msra.mxu0 %v1421
        %1607 = vmatpush.bf16.msra.mxu0 %v1420
        %1608 = vmatpush.bf16.msra.mxu0 %v1419
        %1609 = vmatpush.bf16.msra.mxu0 %v1418
        %1610 = vmatpush.bf16.msra.mxu0 %v1417
        %1611 = vmatmul.bf16.gmra.mxu0 %v1043
        %v1612 = vpop.f32.mrf.mxu0
        %v1613 = vadd.f32 %v1584, %v1612
        %v1614 = vpop.f32.mrf.mxu0
        %v1615 = vadd.f32 %v1586, %v1614
        %1616 = vmatmul.bf16.gmra.mxu0 %v1052
        %v1617 = vpop.f32.mrf.mxu0
        %v1618 = vadd.f32 %v1589, %v1617
        %v1619 = vpop.f32.mrf.mxu0
        %v1620 = vadd.f32 %v1591, %v1619
        %1621 = vmatmul.bf16.gmra.mxu0 %v1061
        %v1622 = vpop.f32.mrf.mxu0
        %v1623 = vadd.f32 %v1594, %v1622
        %v1624 = vpop.f32.mrf.mxu0
        %v1625 = vadd.f32 %v1596, %v1624
        %1626 = vmatmul.bf16.gmra.mxu0 %v1070
        %v1627 = vpop.f32.mrf.mxu0
        %v1628 = vadd.f32 %v1599, %v1627
        %v1629 = vpop.f32.mrf.mxu0
        %v1630 = vadd.f32 %v1601, %v1629
        %1631 = vdwg.mxu0
        %1632 = vmatpush.bf16.msra.mxu0 %v1432
        %1633 = vmatpush.bf16.msra.mxu0 %v1431
        %1634 = vmatpush.bf16.msra.mxu0 %v1430
        %1635 = vmatpush.bf16.msra.mxu0 %v1429
        %1636 = vmatpush.bf16.msra.mxu0 %v1428
        %1637 = vmatpush.bf16.msra.mxu0 %v1427
        %1638 = vmatpush.bf16.msra.mxu0 %v1426
        %1639 = vmatpush.bf16.msra.mxu0 %v1425
        %1640 = vmatmul.bf16.gmra.mxu0 %v1044
        %v1641 = vpop.f32.mrf.mxu0
        %v1642 = vadd.f32 %v1613, %v1641
        %v1643 = vpop.f32.mrf.mxu0
        %v1644 = vadd.f32 %v1615, %v1643
        %1645 = vmatmul.bf16.gmra.mxu0 %v1053
        %v1646 = vpop.f32.mrf.mxu0
        %v1647 = vadd.f32 %v1618, %v1646
        %v1648 = vpop.f32.mrf.mxu0
        %v1649 = vadd.f32 %v1620, %v1648
        %1650 = vmatmul.bf16.gmra.mxu0 %v1062
        %v1651 = vpop.f32.mrf.mxu0
        %v1652 = vadd.f32 %v1623, %v1651
        %v1653 = vpop.f32.mrf.mxu0
        %v1654 = vadd.f32 %v1625, %v1653
        %1655 = vmatmul.bf16.gmra.mxu0 %v1071
        %v1656 = vpop.f32.mrf.mxu0
        %v1657 = vadd.f32 %v1628, %v1656
        %v1658 = vpop.f32.mrf.mxu0
        %v1659 = vadd.f32 %v1630, %v1658
        %1660 = vdwg.mxu0
        %1661 = vmatpush.bf16.msra.mxu0 %v1440
        %1662 = vmatpush.bf16.msra.mxu0 %v1439
        %1663 = vmatpush.bf16.msra.mxu0 %v1438
        %1664 = vmatpush.bf16.msra.mxu0 %v1437
        %1665 = vmatpush.bf16.msra.mxu0 %v1436
        %1666 = vmatpush.bf16.msra.mxu0 %v1435
        %1667 = vmatpush.bf16.msra.mxu0 %v1434
        %1668 = vmatpush.bf16.msra.mxu0 %v1433
        %1669 = vmatmul.bf16.gmra.mxu0 %v1045
        %v1670 = vpop.f32.mrf.mxu0
        %v1671 = vadd.f32 %v1642, %v1670
        %v1672 = vpop.f32.mrf.mxu0
        %v1673 = vadd.f32 %v1644, %v1672
        %1674 = vmatmul.bf16.gmra.mxu0 %v1054
        %v1675 = vpop.f32.mrf.mxu0
        %v1676 = vadd.f32 %v1647, %v1675
        %v1677 = vpop.f32.mrf.mxu0
        %v1678 = vadd.f32 %v1649, %v1677
        %1679 = vmatmul.bf16.gmra.mxu0 %v1063
        %v1680 = vpop.f32.mrf.mxu0
        %v1681 = vadd.f32 %v1652, %v1680
        %v1682 = vpop.f32.mrf.mxu0
        %v1683 = vadd.f32 %v1654, %v1682
        %1684 = vmatmul.bf16.gmra.mxu0 %v1072
        %v1685 = vpop.f32.mrf.mxu0
        %v1686 = vadd.f32 %v1657, %v1685
        %v1687 = vpop.f32.mrf.mxu0
        %v1688 = vadd.f32 %v1659, %v1687
        %1689 = vdwg.mxu0
        %1690 = vmatpush.bf16.msra.mxu0 %v1448
        %1691 = vmatpush.bf16.msra.mxu0 %v1447
        %1692 = vmatpush.bf16.msra.mxu0 %v1446
        %1693 = vmatpush.bf16.msra.mxu0 %v1445
        %1694 = vmatpush.bf16.msra.mxu0 %v1444
        %1695 = vmatpush.bf16.msra.mxu0 %v1443
        %1696 = vmatpush.bf16.msra.mxu0 %v1442
        %1697 = vmatpush.bf16.msra.mxu0 %v1441
        %1698 = vmatmul.bf16.gmra.mxu0 %v1046
        %v1699 = vpop.f32.mrf.mxu0
        %v1700 = vadd.f32 %v1671, %v1699
        %v1701 = vpop.f32.mrf.mxu0
        %v1702 = vadd.f32 %v1673, %v1701
        %1703 = vmatmul.bf16.gmra.mxu0 %v1055
        %v1704 = vpop.f32.mrf.mxu0
        %v1705 = vadd.f32 %v1676, %v1704
        %v1706 = vpop.f32.mrf.mxu0
        %v1707 = vadd.f32 %v1678, %v1706
        %1708 = vmatmul.bf16.gmra.mxu0 %v1064
        %v1709 = vpop.f32.mrf.mxu0
        %v1710 = vadd.f32 %v1681, %v1709
        %v1711 = vpop.f32.mrf.mxu0
        %v1712 = vadd.f32 %v1683, %v1711
        %1713 = vmatmul.bf16.gmra.mxu0 %v1073
        %v1714 = vpop.f32.mrf.mxu0
        %v1715 = vadd.f32 %v1686, %v1714
        %v1716 = vpop.f32.mrf.mxu0
        %v1717 = vadd.f32 %v1688, %v1716
        %1718 = vdwg.mxu0
        %1719 = vmatpush.bf16.msra.mxu0 %v1456
        %1720 = vmatpush.bf16.msra.mxu0 %v1455
        %1721 = vmatpush.bf16.msra.mxu0 %v1454
        %1722 = vmatpush.bf16.msra.mxu0 %v1453
        %1723 = vmatpush.bf16.msra.mxu0 %v1452
        %1724 = vmatpush.bf16.msra.mxu0 %v1451
        %1725 = vmatpush.bf16.msra.mxu0 %v1450
        %1726 = vmatpush.bf16.msra.mxu0 %v1449
        %1727 = vmatmul.bf16.gmra.mxu0 %v1047
        %v1728 = vpop.f32.mrf.mxu0
        %v1729 = vadd.f32 %v1700, %v1728
        %v1730 = vpop.f32.mrf.mxu0
        %v1731 = vadd.f32 %v1702, %v1730
        %1732 = vmatmul.bf16.gmra.mxu0 %v1056
        %v1733 = vpop.f32.mrf.mxu0
        %v1734 = vadd.f32 %v1705, %v1733
        %v1735 = vpop.f32.mrf.mxu0
        %v1736 = vadd.f32 %v1707, %v1735
        %1737 = vmatmul.bf16.gmra.mxu0 %v1065
        %v1738 = vpop.f32.mrf.mxu0
        %v1739 = vadd.f32 %v1710, %v1738
        %v1740 = vpop.f32.mrf.mxu0
        %v1741 = vadd.f32 %v1712, %v1740
        %1742 = vmatmul.bf16.gmra.mxu0 %v1074
        %v1743 = vpop.f32.mrf.mxu0
        %v1744 = vadd.f32 %v1715, %v1743
        %v1745 = vpop.f32.mrf.mxu0
        %v1746 = vadd.f32 %v1717, %v1745
        %1747 = vdwg.mxu0
        %1748 = vmatpush.bf16.msra.mxu0 %v1464
        %1749 = vmatpush.bf16.msra.mxu0 %v1463
        %1750 = vmatpush.bf16.msra.mxu0 %v1462
        %1751 = vmatpush.bf16.msra.mxu0 %v1461
        %1752 = vmatpush.bf16.msra.mxu0 %v1460
        %1753 = vmatpush.bf16.msra.mxu0 %v1459
        %1754 = vmatpush.bf16.msra.mxu0 %v1458
        %1755 = vmatpush.bf16.msra.mxu0 %v1457
        %1756 = vmatmul.bf16.gmra.mxu0 %v1048
        %v1757 = vpop.f32.mrf.mxu0
        %v1758 = vadd.f32 %v1729, %v1757
        %v1759 = vpop.f32.mrf.mxu0
        %v1760 = vadd.f32 %v1731, %v1759
        %1761 = vmatmul.bf16.gmra.mxu0 %v1057
        %v1762 = vpop.f32.mrf.mxu0
        %v1763 = vadd.f32 %v1734, %v1762
        %v1764 = vpop.f32.mrf.mxu0
        %v1765 = vadd.f32 %v1736, %v1764
        %1766 = vmatmul.bf16.gmra.mxu0 %v1066
        %v1767 = vpop.f32.mrf.mxu0
        %v1768 = vadd.f32 %v1739, %v1767
        %v1769 = vpop.f32.mrf.mxu0
        %v1770 = vadd.f32 %v1741, %v1769
        %1771 = vmatmul.bf16.gmra.mxu0 %v1075
        %v1772 = vpop.f32.mrf.mxu0
        %v1773 = vadd.f32 %v1744, %v1772
        %v1774 = vpop.f32.mrf.mxu0
        %v1775 = vadd.f32 %v1746, %v1774
        %1776 = vdwg.mxu0
        %1777 = vmatpush.bf16.msra.mxu0 %v1472
        %1778 = vmatpush.bf16.msra.mxu0 %v1471
        %1779 = vmatpush.bf16.msra.mxu0 %v1470
        %1780 = vmatpush.bf16.msra.mxu0 %v1469
        %1781 = vmatpush.bf16.msra.mxu0 %v1468
        %1782 = vmatpush.bf16.msra.mxu0 %v1467
        %1783 = vmatpush.bf16.msra.mxu0 %v1466
        %1784 = vmatpush.bf16.msra.mxu0 %v1465
        %1785 = vmatmul.bf16.gmra.mxu0 %v1049
        %v1786 = vpop.f32.mrf.mxu0
        %v1787 = vadd.f32 %v1758, %v1786
        %v1788 = vpop.f32.mrf.mxu0
        %v1789 = vadd.f32 %v1760, %v1788
        %1790 = vmatmul.bf16.gmra.mxu0 %v1058
        %v1791 = vpop.f32.mrf.mxu0
        %v1792 = vadd.f32 %v1763, %v1791
        %v1793 = vpop.f32.mrf.mxu0
        %v1794 = vadd.f32 %v1765, %v1793
        %1795 = vmatmul.bf16.gmra.mxu0 %v1067
        %v1796 = vpop.f32.mrf.mxu0
        %v1797 = vadd.f32 %v1768, %v1796
        %v1798 = vpop.f32.mrf.mxu0
        %v1799 = vadd.f32 %v1770, %v1798
        %1800 = vmatmul.bf16.gmra.mxu0 %v1076
        %v1801 = vpop.f32.mrf.mxu0
        %v1802 = vadd.f32 %v1773, %v1801
        %v1803 = vpop.f32.mrf.mxu0
        %v1804 = vadd.f32 %v1775, %v1803
        %1805 = vdwg.mxu0
        %v1806 = vxor.u32 %v1787, 2147483648
        %v1807 = vxor.u32 %v1789, 2147483648
        %v1808 = vxor.u32 %v1792, 2147483648
        %v1809 = vxor.u32 %v1794, 2147483648
        %v1810 = vxor.u32 %v1797, 2147483648
        %v1811 = vxor.u32 %v1799, 2147483648
        %v1812 = vxor.u32 %v1802, 2147483648
        %v1813 = vxor.u32 %v1804, 2147483648
        %v1814 = vmul.f32 %v1806, 1.442695
        %v1815 = vpow.pop %v1814
        %v1816 = vmul.f32 %v1807, 1.442695
        %v1817 = vpow.pop %v1816
        %v1818 = vmul.f32 %v1808, 1.442695
        %v1819 = vpow.pop %v1818
        %v1820 = vmul.f32 %v1809, 1.442695
        %v1821 = vpow.pop %v1820
        %v1822 = vmul.f32 %v1810, 1.442695
        %v1823 = vpow.pop %v1822
        %v1824 = vmul.f32 %v1811, 1.442695
        %v1825 = vpow.pop %v1824
        %v1826 = vmul.f32 %v1812, 1.442695
        %v1827 = vpow.pop %v1826
        %v1828 = vmul.f32 %v1813, 1.442695
        %v1829 = vpow.pop %v1828
        %v1830 = vadd.f32 %v1815, 1.0
        %v1831 = vadd.f32 %v1817, 1.0
        %v1832 = vadd.f32 %v1819, 1.0
        %v1833 = vadd.f32 %v1821, 1.0
        %v1834 = vadd.f32 %v1823, 1.0
        %v1835 = vadd.f32 %v1825, 1.0
        %v1836 = vadd.f32 %v1827, 1.0
        %v1837 = vadd.f32 %v1829, 1.0
        %v1838 = vrcp.pop %v1830
        %v1839 = vmul.f32 %v1830, %v1838
        %v1840 = vsub.f32 1.0, %v1839
        %v1841 = vmul.f32 %v1838, %v1840
        %v1842 = vadd.f32 %v1838, %v1841
        %vm1843 = vweird.f32 %v1830
        %vm1844 = vweird.f32 %v1838
        %vm1845 = vmor %vm1843, %vm1844
        %v1846 = vsel %vm1845, %v1838, %v1842
        %v1847 = vand.u32 2147483647, %v1830
        %vm1848 = vcmp.eq.f32.partialorder %v1847, 8.507059e+37
        %v1849 = vand.u32 %v1830, 2147483648
        %v1850 = vor.u32 1.1754944e-38, %v1849
        %v1851 = vsel %vm1848, %v1850, %v1846
        %v1852 = vmul.f32 1.0, %v1851
        %v1853 = vrcp.pop %v1831
        %v1854 = vmul.f32 %v1831, %v1853
        %v1855 = vsub.f32 1.0, %v1854
        %v1856 = vmul.f32 %v1853, %v1855
        %v1857 = vadd.f32 %v1853, %v1856
        %vm1858 = vweird.f32 %v1831
        %vm1859 = vweird.f32 %v1853
        %vm1860 = vmor %vm1858, %vm1859
        %v1861 = vsel %vm1860, %v1853, %v1857
        %v1862 = vand.u32 2147483647, %v1831
        %vm1863 = vcmp.eq.f32.partialorder %v1862, 8.507059e+37
        %v1864 = vand.u32 %v1831, 2147483648
        %v1865 = vor.u32 1.1754944e-38, %v1864
        %v1866 = vsel %vm1863, %v1865, %v1861
        %v1867 = vmul.f32 1.0, %v1866
        %v1868 = vrcp.pop %v1832
        %v1869 = vmul.f32 %v1832, %v1868
        %v1870 = vsub.f32 1.0, %v1869
        %v1871 = vmul.f32 %v1868, %v1870
        %v1872 = vadd.f32 %v1868, %v1871
        %vm1873 = vweird.f32 %v1832
        %vm1874 = vweird.f32 %v1868
        %vm1875 = vmor %vm1873, %vm1874
        %v1876 = vsel %vm1875, %v1868, %v1872
        %v1877 = vand.u32 2147483647, %v1832
        %vm1878 = vcmp.eq.f32.partialorder %v1877, 8.507059e+37
        %v1879 = vand.u32 %v1832, 2147483648
        %v1880 = vor.u32 1.1754944e-38, %v1879
        %v1881 = vsel %vm1878, %v1880, %v1876
        %v1882 = vmul.f32 1.0, %v1881
        %v1883 = vrcp.pop %v1833
        %v1884 = vmul.f32 %v1833, %v1883
        %v1885 = vsub.f32 1.0, %v1884
        %v1886 = vmul.f32 %v1883, %v1885
        %v1887 = vadd.f32 %v1883, %v1886
        %vm1888 = vweird.f32 %v1833
        %vm1889 = vweird.f32 %v1883
        %vm1890 = vmor %vm1888, %vm1889
        %v1891 = vsel %vm1890, %v1883, %v1887
        %v1892 = vand.u32 2147483647, %v1833
        %vm1893 = vcmp.eq.f32.partialorder %v1892, 8.507059e+37
        %v1894 = vand.u32 %v1833, 2147483648
        %v1895 = vor.u32 1.1754944e-38, %v1894
        %v1896 = vsel %vm1893, %v1895, %v1891
        %v1897 = vmul.f32 1.0, %v1896
        %v1898 = vrcp.pop %v1834
        %v1899 = vmul.f32 %v1834, %v1898
        %v1900 = vsub.f32 1.0, %v1899
        %v1901 = vmul.f32 %v1898, %v1900
        %v1902 = vadd.f32 %v1898, %v1901
        %vm1903 = vweird.f32 %v1834
        %vm1904 = vweird.f32 %v1898
        %vm1905 = vmor %vm1903, %vm1904
        %v1906 = vsel %vm1905, %v1898, %v1902
        %v1907 = vand.u32 2147483647, %v1834
        %vm1908 = vcmp.eq.f32.partialorder %v1907, 8.507059e+37
        %v1909 = vand.u32 %v1834, 2147483648
        %v1910 = vor.u32 1.1754944e-38, %v1909
        %v1911 = vsel %vm1908, %v1910, %v1906
        %v1912 = vmul.f32 1.0, %v1911
        %v1913 = vrcp.pop %v1835
        %v1914 = vmul.f32 %v1835, %v1913
        %v1915 = vsub.f32 1.0, %v1914
        %v1916 = vmul.f32 %v1913, %v1915
        %v1917 = vadd.f32 %v1913, %v1916
        %vm1918 = vweird.f32 %v1835
        %vm1919 = vweird.f32 %v1913
        %vm1920 = vmor %vm1918, %vm1919
        %v1921 = vsel %vm1920, %v1913, %v1917
        %v1922 = vand.u32 2147483647, %v1835
        %vm1923 = vcmp.eq.f32.partialorder %v1922, 8.507059e+37
        %v1924 = vand.u32 %v1835, 2147483648
        %v1925 = vor.u32 1.1754944e-38, %v1924
        %v1926 = vsel %vm1923, %v1925, %v1921
        %v1927 = vmul.f32 1.0, %v1926
        %v1928 = vrcp.pop %v1836
        %v1929 = vmul.f32 %v1836, %v1928
        %v1930 = vsub.f32 1.0, %v1929
        %v1931 = vmul.f32 %v1928, %v1930
        %v1932 = vadd.f32 %v1928, %v1931
        %vm1933 = vweird.f32 %v1836
        %vm1934 = vweird.f32 %v1928
        %vm1935 = vmor %vm1933, %vm1934
        %v1936 = vsel %vm1935, %v1928, %v1932
        %v1937 = vand.u32 2147483647, %v1836
        %vm1938 = vcmp.eq.f32.partialorder %v1937, 8.507059e+37
        %v1939 = vand.u32 %v1836, 2147483648
        %v1940 = vor.u32 1.1754944e-38, %v1939
        %v1941 = vsel %vm1938, %v1940, %v1936
        %v1942 = vmul.f32 1.0, %v1941
        %v1943 = vrcp.pop %v1837
        %v1944 = vmul.f32 %v1837, %v1943
        %v1945 = vsub.f32 1.0, %v1944
        %v1946 = vmul.f32 %v1943, %v1945
        %v1947 = vadd.f32 %v1943, %v1946
        %vm1948 = vweird.f32 %v1837
        %vm1949 = vweird.f32 %v1943
        %vm1950 = vmor %vm1948, %vm1949
        %v1951 = vsel %vm1950, %v1943, %v1947
        %v1952 = vand.u32 2147483647, %v1837
        %vm1953 = vcmp.eq.f32.partialorder %v1952, 8.507059e+37
        %v1954 = vand.u32 %v1837, 2147483648
        %v1955 = vor.u32 1.1754944e-38, %v1954
        %v1956 = vsel %vm1953, %v1955, %v1951
        %v1957 = vmul.f32 1.0, %v1956
        %v1958 = vmul.f32 %v1787, %v1852
        %v1959 = vmul.f32 %v1789, %v1867
        %v1960 = vmul.f32 %v1792, %v1882
        %v1961 = vmul.f32 %v1794, %v1897
        %v1962 = vmul.f32 %v1797, %v1912
        %v1963 = vmul.f32 %v1799, %v1927
        %v1964 = vmul.f32 %v1802, %v1942
        %v1965 = vmul.f32 %v1804, %v1957
        %v1966 = vpack.c.bf16 %v1959, %v1958
        %v1967 = vpack.c.bf16 %v1961, %v1960
        %v1968 = vpack.c.bf16 %v1963, %v1962
        %v1969 = vpack.c.bf16 %v1965, %v1964
        %v1970 = vld [vmem:[%s3] sm:$0xf]
        %v1971 = vld [vmem:[%s3 + $0x4] sm:$0xf]
        %v1972 = vld [vmem:[%s3 + $0x8] sm:$0xf]
        %v1973 = vld [vmem:[%s3 + $0xc] sm:$0xf]
        %v1974 = vld [vmem:[%s3 + $0x10] sm:$0xf]
        %v1975 = vld [vmem:[%s3 + $0x14] sm:$0xf]
        %v1976 = vld [vmem:[%s3 + $0x18] sm:$0xf]
        %v1977 = vld [vmem:[%s3 + $0x1c] sm:$0xf]
        %v1978 = vld [vmem:[%s3 + $0x20] sm:$0xf]
        %v1979 = vld [vmem:[%s3 + $0x24] sm:$0xf]
        %v1980 = vld [vmem:[%s3 + $0x28] sm:$0xf]
        %v1981 = vld [vmem:[%s3 + $0x2c] sm:$0xf]
        %v1982 = vld [vmem:[%s3 + $0x30] sm:$0xf]
        %v1983 = vld [vmem:[%s3 + $0x34] sm:$0xf]
        %v1984 = vld [vmem:[%s3 + $0x38] sm:$0xf]
        %v1985 = vld [vmem:[%s3 + $0x3c] sm:$0xf]
        %v1986 = vperm.slane %v278, 2
        %v2003 = vunpack.c.l.b16 %v1970
        %v2004 = vunpack.c.l.b16 %v1971
        %v2005 = vunpack.c.l.b16 %v1972
        %v2006 = vunpack.c.l.b16 %v1973
        %v2007 = vunpack.c.l.b16 %v1974
        %v2008 = vunpack.c.l.b16 %v1975
        %v2009 = vunpack.c.l.b16 %v1976
        %v2010 = vunpack.c.l.b16 %v1977
        %v2011 = vunpack.c.l.b16 %v1978
        %v2012 = vunpack.c.l.b16 %v1979
        %v2013 = vunpack.c.l.b16 %v1980
        %v2014 = vunpack.c.l.b16 %v1981
        %v2015 = vunpack.c.l.b16 %v1982
        %v2016 = vunpack.c.l.b16 %v1983
        %v2017 = vunpack.c.l.b16 %v1984
        %v2018 = vunpack.c.l.b16 %v1985
        %v2019 = vpack.c.b16 %v2004, %v2003
        %v2020 = vpack.c.b16 %v2006, %v2005
        %v2021 = vpack.c.b16 %v2008, %v2007
        %v2022 = vpack.c.b16 %v2010, %v2009
        %v2023 = vpack.c.b16 %v2012, %v2011
        %v2024 = vpack.c.b16 %v2014, %v2013
        %v2025 = vpack.c.b16 %v2016, %v2015
        %v2026 = vpack.c.b16 %v2018, %v2017
        %2035 = vmatpush.bf16.msra.mxu0 %v2026
        %2036 = vmatpush.bf16.msra.mxu0 %v2025
        %2037 = vmatpush.bf16.msra.mxu0 %v2024
        %2038 = vmatpush.bf16.msra.mxu0 %v2023
        %2039 = vmatpush.bf16.msra.mxu0 %v2022
        %2040 = vmatpush.bf16.msra.mxu0 %v2021
        %2041 = vmatpush.bf16.msra.mxu0 %v2020
        %2042 = vmatpush.bf16.msra.mxu0 %v2019
        %2043 = vmatmul.bf16.gmra.mxu0 %v1966
        %v2044 = vpop.f32.mrf.mxu0
        %v2045 = vadd.f32 %v1986, %v2044
        %v2046 = vpop.f32.mrf.mxu0
        %v2047 = vadd.f32 %v1986, %v2046
        %2048 = vmatmul.bf16.gmra.mxu0 %v1967
        %v2049 = vpop.f32.mrf.mxu0
        %v2050 = vadd.f32 %v1986, %v2049
        %v2051 = vpop.f32.mrf.mxu0
        %v2052 = vadd.f32 %v1986, %v2051
        %2053 = vmatmul.bf16.gmra.mxu0 %v1968
        %v2054 = vpop.f32.mrf.mxu0
        %v2055 = vadd.f32 %v1986, %v2054
        %v2056 = vpop.f32.mrf.mxu0
        %v2057 = vadd.f32 %v1986, %v2056
        %2058 = vmatmul.bf16.gmra.mxu0 %v1969
        %v2059 = vpop.f32.mrf.mxu0
        %v2060 = vadd.f32 %v1986, %v2059
        %v2061 = vpop.f32.mrf.mxu0
        %v2062 = vadd.f32 %v1986, %v2061
        %2063 = vdwg.mxu0
        %v2064 = vld [vmem:[#allocation4] sm:$0xff]
        %v2065 = vld [vmem:[#allocation4 + $0x8] sm:$0xff]
        %v2066 = vld [vmem:[#allocation4 + $0x10] sm:$0xff]
        %v2067 = vld [vmem:[#allocation4 + $0x18] sm:$0xff]
        %v2068 = vld [vmem:[#allocation4 + $0x20] sm:$0xff]
        %v2069 = vld [vmem:[#allocation4 + $0x28] sm:$0xff]
        %v2070 = vld [vmem:[#allocation4 + $0x30] sm:$0xff]
        %v2071 = vld [vmem:[#allocation4 + $0x38] sm:$0xff]
        %v2072 = vadd.f32 %v2045, %v2064
        %v2073 = vadd.f32 %v2047, %v2065
        %v2074 = vadd.f32 %v2050, %v2066
        %v2075 = vadd.f32 %v2052, %v2067
        %v2076 = vadd.f32 %v2055, %v2068
        %v2077 = vadd.f32 %v2057, %v2069
        %v2078 = vadd.f32 %v2060, %v2070
        %v2079 = vadd.f32 %v2062, %v2071
        %v2080 = vpack.c.bf16 %v2073, %v2072
        %v2081 = vpack.c.bf16 %v2075, %v2074
        %v2082 = vpack.c.bf16 %v2077, %v2076
        %v2083 = vpack.c.bf16 %v2079, %v2078
        %v2084 = vld [vmem:[%s4] sm:$0xf]
        %v2085 = vld [vmem:[%s4 + $0x4] sm:$0xf]
        %v2086 = vld [vmem:[%s4 + $0x8] sm:$0xf]
        %v2087 = vld [vmem:[%s4 + $0xc] sm:$0xf]
        %v2088 = vld [vmem:[%s4 + $0x10] sm:$0xf]
        %v2089 = vld [vmem:[%s4 + $0x14] sm:$0xf]
        %v2090 = vld [vmem:[%s4 + $0x18] sm:$0xf]
        %v2091 = vld [vmem:[%s4 + $0x1c] sm:$0xf]
        %v2092 = vld [vmem:[%s4 + $0x20] sm:$0xf]
        %v2093 = vld [vmem:[%s4 + $0x24] sm:$0xf]
        %v2094 = vld [vmem:[%s4 + $0x28] sm:$0xf]
        %v2095 = vld [vmem:[%s4 + $0x2c] sm:$0xf]
        %v2096 = vld [vmem:[%s4 + $0x30] sm:$0xf]
        %v2097 = vld [vmem:[%s4 + $0x34] sm:$0xf]
        %v2098 = vld [vmem:[%s4 + $0x38] sm:$0xf]
        %v2099 = vld [vmem:[%s4 + $0x3c] sm:$0xf]
        %v2100 = vperm.slane %v278, 3
        %v2117 = vunpack.c.l.b16 %v2084
        %v2118 = vunpack.c.l.b16 %v2085
        %v2119 = vunpack.c.l.b16 %v2086
        %v2120 = vunpack.c.l.b16 %v2087
        %v2121 = vunpack.c.l.b16 %v2088
        %v2122 = vunpack.c.l.b16 %v2089
        %v2123 = vunpack.c.l.b16 %v2090
        %v2124 = vunpack.c.l.b16 %v2091
        %v2125 = vunpack.c.l.b16 %v2092
        %v2126 = vunpack.c.l.b16 %v2093
        %v2127 = vunpack.c.l.b16 %v2094
        %v2128 = vunpack.c.l.b16 %v2095
        %v2129 = vunpack.c.l.b16 %v2096
        %v2130 = vunpack.c.l.b16 %v2097
        %v2131 = vunpack.c.l.b16 %v2098
        %v2132 = vunpack.c.l.b16 %v2099
        %v2133 = vpack.c.b16 %v2118, %v2117
        %v2134 = vpack.c.b16 %v2120, %v2119
        %v2135 = vpack.c.b16 %v2122, %v2121
        %v2136 = vpack.c.b16 %v2124, %v2123
        %v2137 = vpack.c.b16 %v2126, %v2125
        %v2138 = vpack.c.b16 %v2128, %v2127
        %v2139 = vpack.c.b16 %v2130, %v2129
        %v2140 = vpack.c.b16 %v2132, %v2131
        %2149 = vmatpush.bf16.msra.mxu0 %v2140
        %2150 = vmatpush.bf16.msra.mxu0 %v2139
        %2151 = vmatpush.bf16.msra.mxu0 %v2138
        %2152 = vmatpush.bf16.msra.mxu0 %v2137
        %2153 = vmatpush.bf16.msra.mxu0 %v2136
        %2154 = vmatpush.bf16.msra.mxu0 %v2135
        %2155 = vmatpush.bf16.msra.mxu0 %v2134
        %2156 = vmatpush.bf16.msra.mxu0 %v2133
        %2157 = vmatmul.bf16.gmra.mxu0 %v2080
        %v2158 = vpop.f32.mrf.mxu0
        %v2159 = vadd.f32 %v2100, %v2158
        %v2160 = vpop.f32.mrf.mxu0
        %v2161 = vadd.f32 %v2100, %v2160
        %2162 = vmatmul.bf16.gmra.mxu0 %v2081
        %v2163 = vpop.f32.mrf.mxu0
        %v2164 = vadd.f32 %v2100, %v2163
        %v2165 = vpop.f32.mrf.mxu0
        %v2166 = vadd.f32 %v2100, %v2165
        %2167 = vmatmul.bf16.gmra.mxu0 %v2082
        %v2168 = vpop.f32.mrf.mxu0
        %v2169 = vadd.f32 %v2100, %v2168
        %v2170 = vpop.f32.mrf.mxu0
        %v2171 = vadd.f32 %v2100, %v2170
        %2172 = vmatmul.bf16.gmra.mxu0 %v2083
        %v2173 = vpop.f32.mrf.mxu0
        %v2174 = vadd.f32 %v2100, %v2173
        %v2175 = vpop.f32.mrf.mxu0
        %v2176 = vadd.f32 %v2100, %v2175
        %2177 = vdwg.mxu0
        %v2178 = vxor.u32 %v2159, 2147483648
        %v2179 = vxor.u32 %v2161, 2147483648
        %v2180 = vxor.u32 %v2164, 2147483648
        %v2181 = vxor.u32 %v2166, 2147483648
        %v2182 = vxor.u32 %v2169, 2147483648
        %v2183 = vxor.u32 %v2171, 2147483648
        %v2184 = vxor.u32 %v2174, 2147483648
        %v2185 = vxor.u32 %v2176, 2147483648
        %v2186 = vmul.f32 %v2178, 1.442695
        %v2187 = vpow.pop %v2186
        %v2188 = vmul.f32 %v2179, 1.442695
        %v2189 = vpow.pop %v2188
        %v2190 = vmul.f32 %v2180, 1.442695
        %v2191 = vpow.pop %v2190
        %v2192 = vmul.f32 %v2181, 1.442695
        %v2193 = vpow.pop %v2192
        %v2194 = vmul.f32 %v2182, 1.442695
        %v2195 = vpow.pop %v2194
        %v2196 = vmul.f32 %v2183, 1.442695
        %v2197 = vpow.pop %v2196
        %v2198 = vmul.f32 %v2184, 1.442695
        %v2199 = vpow.pop %v2198
        %v2200 = vmul.f32 %v2185, 1.442695
        %v2201 = vpow.pop %v2200
        %v2202 = vadd.f32 %v2187, 1.0
        %v2203 = vadd.f32 %v2189, 1.0
        %v2204 = vadd.f32 %v2191, 1.0
        %v2205 = vadd.f32 %v2193, 1.0
        %v2206 = vadd.f32 %v2195, 1.0
        %v2207 = vadd.f32 %v2197, 1.0
        %v2208 = vadd.f32 %v2199, 1.0
        %v2209 = vadd.f32 %v2201, 1.0
        %v2210 = vrcp.pop %v2202
        %v2211 = vmul.f32 %v2202, %v2210
        %v2212 = vsub.f32 1.0, %v2211
        %v2213 = vmul.f32 %v2210, %v2212
        %v2214 = vadd.f32 %v2210, %v2213
        %vm2215 = vweird.f32 %v2202
        %vm2216 = vweird.f32 %v2210
        %vm2217 = vmor %vm2215, %vm2216
        %v2218 = vsel %vm2217, %v2210, %v2214
        %v2219 = vand.u32 2147483647, %v2202
        %vm2220 = vcmp.eq.f32.partialorder %v2219, 8.507059e+37
        %v2221 = vand.u32 %v2202, 2147483648
        %v2222 = vor.u32 1.1754944e-38, %v2221
        %v2223 = vsel %vm2220, %v2222, %v2218
        %v2224 = vmul.f32 1.0, %v2223
        %v2225 = vrcp.pop %v2203
        %v2226 = vmul.f32 %v2203, %v2225
        %v2227 = vsub.f32 1.0, %v2226
        %v2228 = vmul.f32 %v2225, %v2227
        %v2229 = vadd.f32 %v2225, %v2228
        %vm2230 = vweird.f32 %v2203
        %vm2231 = vweird.f32 %v2225
        %vm2232 = vmor %vm2230, %vm2231
        %v2233 = vsel %vm2232, %v2225, %v2229
        %v2234 = vand.u32 2147483647, %v2203
        %vm2235 = vcmp.eq.f32.partialorder %v2234, 8.507059e+37
        %v2236 = vand.u32 %v2203, 2147483648
        %v2237 = vor.u32 1.1754944e-38, %v2236
        %v2238 = vsel %vm2235, %v2237, %v2233
        %v2239 = vmul.f32 1.0, %v2238
        %v2240 = vrcp.pop %v2204
        %v2241 = vmul.f32 %v2204, %v2240
        %v2242 = vsub.f32 1.0, %v2241
        %v2243 = vmul.f32 %v2240, %v2242
        %v2244 = vadd.f32 %v2240, %v2243
        %vm2245 = vweird.f32 %v2204
        %vm2246 = vweird.f32 %v2240
        %vm2247 = vmor %vm2245, %vm2246
        %v2248 = vsel %vm2247, %v2240, %v2244
        %v2249 = vand.u32 2147483647, %v2204
        %vm2250 = vcmp.eq.f32.partialorder %v2249, 8.507059e+37
        %v2251 = vand.u32 %v2204, 2147483648
        %v2252 = vor.u32 1.1754944e-38, %v2251
        %v2253 = vsel %vm2250, %v2252, %v2248
        %v2254 = vmul.f32 1.0, %v2253
        %v2255 = vrcp.pop %v2205
        %v2256 = vmul.f32 %v2205, %v2255
        %v2257 = vsub.f32 1.0, %v2256
        %v2258 = vmul.f32 %v2255, %v2257
        %v2259 = vadd.f32 %v2255, %v2258
        %vm2260 = vweird.f32 %v2205
        %vm2261 = vweird.f32 %v2255
        %vm2262 = vmor %vm2260, %vm2261
        %v2263 = vsel %vm2262, %v2255, %v2259
        %v2264 = vand.u32 2147483647, %v2205
        %vm2265 = vcmp.eq.f32.partialorder %v2264, 8.507059e+37
        %v2266 = vand.u32 %v2205, 2147483648
        %v2267 = vor.u32 1.1754944e-38, %v2266
        %v2268 = vsel %vm2265, %v2267, %v2263
        %v2269 = vmul.f32 1.0, %v2268
        %v2270 = vrcp.pop %v2206
        %v2271 = vmul.f32 %v2206, %v2270
        %v2272 = vsub.f32 1.0, %v2271
        %v2273 = vmul.f32 %v2270, %v2272
        %v2274 = vadd.f32 %v2270, %v2273
        %vm2275 = vweird.f32 %v2206
        %vm2276 = vweird.f32 %v2270
        %vm2277 = vmor %vm2275, %vm2276
        %v2278 = vsel %vm2277, %v2270, %v2274
        %v2279 = vand.u32 2147483647, %v2206
        %vm2280 = vcmp.eq.f32.partialorder %v2279, 8.507059e+37
        %v2281 = vand.u32 %v2206, 2147483648
        %v2282 = vor.u32 1.1754944e-38, %v2281
        %v2283 = vsel %vm2280, %v2282, %v2278
        %v2284 = vmul.f32 1.0, %v2283
        %v2285 = vrcp.pop %v2207
        %v2286 = vmul.f32 %v2207, %v2285
        %v2287 = vsub.f32 1.0, %v2286
        %v2288 = vmul.f32 %v2285, %v2287
        %v2289 = vadd.f32 %v2285, %v2288
        %vm2290 = vweird.f32 %v2207
        %vm2291 = vweird.f32 %v2285
        %vm2292 = vmor %vm2290, %vm2291
        %v2293 = vsel %vm2292, %v2285, %v2289
        %v2294 = vand.u32 2147483647, %v2207
        %vm2295 = vcmp.eq.f32.partialorder %v2294, 8.507059e+37
        %v2296 = vand.u32 %v2207, 2147483648
        %v2297 = vor.u32 1.1754944e-38, %v2296
        %v2298 = vsel %vm2295, %v2297, %v2293
        %v2299 = vmul.f32 1.0, %v2298
        %v2300 = vrcp.pop %v2208
        %v2301 = vmul.f32 %v2208, %v2300
        %v2302 = vsub.f32 1.0, %v2301
        %v2303 = vmul.f32 %v2300, %v2302
        %v2304 = vadd.f32 %v2300, %v2303
        %vm2305 = vweird.f32 %v2208
        %vm2306 = vweird.f32 %v2300
        %vm2307 = vmor %vm2305, %vm2306
        %v2308 = vsel %vm2307, %v2300, %v2304
        %v2309 = vand.u32 2147483647, %v2208
        %vm2310 = vcmp.eq.f32.partialorder %v2309, 8.507059e+37
        %v2311 = vand.u32 %v2208, 2147483648
        %v2312 = vor.u32 1.1754944e-38, %v2311
        %v2313 = vsel %vm2310, %v2312, %v2308
        %v2314 = vmul.f32 1.0, %v2313
        %v2315 = vrcp.pop %v2209
        %v2316 = vmul.f32 %v2209, %v2315
        %v2317 = vsub.f32 1.0, %v2316
        %v2318 = vmul.f32 %v2315, %v2317
        %v2319 = vadd.f32 %v2315, %v2318
        %vm2320 = vweird.f32 %v2209
        %vm2321 = vweird.f32 %v2315
        %vm2322 = vmor %vm2320, %vm2321
        %v2323 = vsel %vm2322, %v2315, %v2319
        %v2324 = vand.u32 2147483647, %v2209
        %vm2325 = vcmp.eq.f32.partialorder %v2324, 8.507059e+37
        %v2326 = vand.u32 %v2209, 2147483648
        %v2327 = vor.u32 1.1754944e-38, %v2326
        %v2328 = vsel %vm2325, %v2327, %v2323
        %v2329 = vmul.f32 1.0, %v2328
        %v2330 = vmul.f32 %v2159, %v2224
        %v2331 = vmul.f32 %v2161, %v2239
        %v2332 = vmul.f32 %v2164, %v2254
        %v2333 = vmul.f32 %v2166, %v2269
        %v2334 = vmul.f32 %v2169, %v2284
        %v2335 = vmul.f32 %v2171, %v2299
        %v2336 = vmul.f32 %v2174, %v2314
        %v2337 = vmul.f32 %v2176, %v2329
        %v2338 = vadd.f32 %v2330, %v2331
        %v2339 = vadd.f32 %v2338, %v2332
        %v2340 = vadd.f32 %v2339, %v2333
        %v2341 = vadd.f32 %v2340, %v2334
        %v2342 = vadd.f32 %v2341, %v2335
        %v2343 = vadd.f32 %v2342, %v2336
        %v2344 = vadd.f32 %v2343, %v2337
        %v2345 = vrot.slane %v2344, 4
        %v2346 = vadd.f32 %v2344, %v2345
        %v2347 = vrot.slane %v2346, 2
        %v2348 = vadd.f32 %v2346, %v2347
        %v2349 = vrot.slane %v2348, 1
        %v2350 = vadd.f32 %v2348, %v2349
        %v2351 = vrcp.pop 64.0
        %v2352 = vmul.f32 64.0, %v2351
        %v2353 = vsub.f32 1.0, %v2352
        %v2354 = vmul.f32 %v2351, %v2353
        %v2355 = vadd.f32 %v2351, %v2354
        %vm2356 = vweird.f32 %v2351
        %v2357 = vsel %vm2356, %v2351, %v2355
        %v2358 = vmul.f32 %v2350, %v2357
        %v2359 = vpack.c.bf16 %v2358, %v2358
        %v2360 = vld [vmem:[%s5] sm:$0xf]
        %v2361 = vld [vmem:[%s5 + $0x4] sm:$0xf]
        %v2362 = vld [vmem:[%s5 + $0x8] sm:$0xf]
        %v2363 = vld [vmem:[%s5 + $0xc] sm:$0xf]
        %v2364 = vld [vmem:[%s5 + $0x10] sm:$0xf]
        %v2365 = vld [vmem:[%s5 + $0x14] sm:$0xf]
        %v2366 = vld [vmem:[%s5 + $0x18] sm:$0xf]
        %v2367 = vld [vmem:[%s5 + $0x1c] sm:$0xf]
        %v2368 = vld [vmem:[%s5 + $0x20] sm:$0xf]
        %v2369 = vld [vmem:[%s5 + $0x24] sm:$0xf]
        %v2370 = vld [vmem:[%s5 + $0x28] sm:$0xf]
        %v2371 = vld [vmem:[%s5 + $0x2c] sm:$0xf]
        %v2372 = vld [vmem:[%s5 + $0x30] sm:$0xf]
        %v2373 = vld [vmem:[%s5 + $0x34] sm:$0xf]
        %v2374 = vld [vmem:[%s5 + $0x38] sm:$0xf]
        %v2375 = vld [vmem:[%s5 + $0x3c] sm:$0xf]
        %v2392 = vunpack.c.l.b16 %v2360
        %v2393 = vunpack.c.l.b16 %v2361
        %v2394 = vunpack.c.l.b16 %v2362
        %v2395 = vunpack.c.l.b16 %v2363
        %v2396 = vunpack.c.l.b16 %v2364
        %v2397 = vunpack.c.l.b16 %v2365
        %v2398 = vunpack.c.l.b16 %v2366
        %v2399 = vunpack.c.l.b16 %v2367
        %v2400 = vunpack.c.l.b16 %v2368
        %v2401 = vunpack.c.l.b16 %v2369
        %v2402 = vunpack.c.l.b16 %v2370
        %v2403 = vunpack.c.l.b16 %v2371
        %v2404 = vunpack.c.l.b16 %v2372
        %v2405 = vunpack.c.l.b16 %v2373
        %v2406 = vunpack.c.l.b16 %v2374
        %v2407 = vunpack.c.l.b16 %v2375
        %v2408 = vpack.c.b16 %v2393, %v2392
        %v2409 = vpack.c.b16 %v2395, %v2394
        %v2410 = vpack.c.b16 %v2397, %v2396
        %v2411 = vpack.c.b16 %v2399, %v2398
        %v2412 = vpack.c.b16 %v2401, %v2400
        %v2413 = vpack.c.b16 %v2403, %v2402
        %v2414 = vpack.c.b16 %v2405, %v2404
        %v2415 = vpack.c.b16 %v2407, %v2406
        %v2425 = vrot.slane %v278, 4
        %2427 = vmatpush.bf16.msra.mxu0 %v2415
        %2428 = vmatpush.bf16.msra.mxu0 %v2414
        %2429 = vmatpush.bf16.msra.mxu0 %v2413
        %2430 = vmatpush.bf16.msra.mxu0 %v2412
        %2431 = vmatpush.bf16.msra.mxu0 %v2411
        %2432 = vmatpush.bf16.msra.mxu0 %v2410
        %2433 = vmatpush.bf16.msra.mxu0 %v2409
        %2434 = vmatpush.bf16.msra.mxu0 %v2408
        %2435 = vmatmul.bf16.gmra.mxu0 %v2359
        %v2436 = vpop.f32.mrf.mxu0
        %v2437 = vadd.f32 %v2425, %v2436
        %v2438 = vpop.f32.mrf.mxu0
        %2439 = vdwg.mxu0
        %2440 = vst [vmem:[%s271] sm:$0x1] %v2437
        %s2441 = sand.u32 %s181, 1
        %s2442 = scalar_lea.sflag [#allocation6], %s2441
        %s2443 = sand.u32 %s181, 1
        %s2444 = scalar_lea.vmem [#allocation5], %s2443
        // Predicated region
        $region49: #{trunk_forward.1} parent=47 // pred_check
          %p2445 = pneg %p191
        $region50: #{trunk_forward.1} parent=47 // pred_check_branch
          %2447 = sbr.rel (%p2445) target = $region52
        $region51: #{trunk_forward.1} parent=47 // pred_region
          %2449 = vsyncadd %s2442, 0
          %s2450 = scalar_lea.hbm %s7, %s21
          %s2452 = sshll.u32 %s2444, 4
          %s2453 = int_to_ptr.vmem [resolvable:$true] %s2452
          %s2454 = sshll.u32 %s2450, 4
          %s2455 = int_to_ptr.hbm [resolvable:$true] %s2454
          %2457 = dma.vmem_to_hbm [thread:$0]  %s2453, 16, %s2455, %s2442
        $region52: #{trunk_forward.1} parent=47 // pred_fallthru
          _
      $region48: #{trunk_forward.1} parent=5 // pred_fallthru
        _
      %p2458 = scmp.le.s32.totalorder 2, %s16
      // Predicated region
      $region53: #{trunk_forward.1} parent=5 // pred_check
        %p2459 = pneg %p2458
      $region54: #{trunk_forward.1} parent=5 // pred_check_branch
        %2461 = sbr.rel (%p2459) target = $region56
      $region55: #{trunk_forward.1} parent=5 // pred_region
        %s2462 = ssub.s32 %s16, 2
        // Predicated region
        $region57: #{trunk_forward.1} parent=55 // pred_check
          %p2463 = pneg %p197
        $region58: #{trunk_forward.1} parent=55 // pred_check_branch
          %2465 = sbr.rel (%p2463) target = $region60
        $region59: #{trunk_forward.1} parent=55 // pred_region
          %s2466 = sand.u32 %s182, 1
          %s2467 = scalar_lea.sflag [#allocation6], %s2466
          %s2468 = sand.u32 %s182, 1
          %s2469 = scalar_lea.vmem [#allocation5], %s2468
          %2471 = dma.done %s2467, 16
        $region60: #{trunk_forward.1} parent=55 // pred_fallthru
          _
      $region56: #{trunk_forward.1} parent=5 // pred_fallthru
        _
    $region6: #{trunk_forward.1} parent=1 // loop_footer
      %s20 = sadd.s32 1, %s16
    $region7: #{trunk_forward.1} parent=1 // loop_footer_branch
      %15 = sbr.rel target = $region3
    $region8: #{trunk_forward.1} parent=1 // loop_exit
      _
    %2472 = vsyncpa [#allocation6], 1
    %s2473 = scalar_lea.sflag [#allocation6], 1
    %2474 = vsyncpa %s2473, 1

</llo_original>
